<compile_context>
chip_gen: v7x
topology: tpu7x:2x2x1
jax: 0.10.0
libtpu: 0.0.40
codegen_flags: <defaults>
</compile_context>

<pallas_src>
import functools
import itertools

import jax
import jax.numpy as jnp
from jax.experimental import pallas as pl
from jax.experimental.pallas import tpu as pltpu


def attention_kernel(x_ref, gamma_ref, beta_ref, wqkv_ref, bqkv_ref,
                     wp_ref, bp_ref, ab_ref, o_ref, qkv_scr, hcat_scr,
                     *, num_heads, key_dim, d, batch_block, seq_len, dim, eps):
    Bb, N, H, kd = batch_block, seq_len, num_heads, key_dim
    hkd = H * kd
    hd = H * d

    # --- LayerNorm over channels (PyTorch default eps=1e-5, biased variance), f32 ---
    # TODO(synk): for resolutions where N % 8 != 0 (e.g. 7x7 windows -> N=49) pad the
    # token axis to a multiple of 8 (masking pad keys through the bias) so these
    # sublane merge/split reshapes stay relayout-free.
    x = x_ref[...].reshape(Bb * N, dim).astype(jnp.float32)
    mean = jnp.mean(x, axis=-1, keepdims=True)
    xc = x - mean
    var = jnp.mean(xc * xc, axis=-1, keepdims=True)
    xn = (xc * jax.lax.rsqrt(var + eps)) * gamma_ref[...] + beta_ref[...]   # (Bb*N, dim)

    # --- Fused QKV projection: ONE full-width MXU matmul for all heads ---
    # (softmax scale already folded into the Q columns / bias in the wrapper)
    qkv = jnp.dot(xn.astype(jnp.bfloat16), wqkv_ref[...],
                  preferred_element_type=jnp.float32) + bqkv_ref[...]       # (Bb*N, h_total)
    qkv_scr[...] = qkv.reshape(Bb, N, 2 * hkd + hd).astype(jnp.bfloat16)

    # --- Head-batched attention: one scores einsum / softmax / PV einsum ---
    # Heads are peeled off the packed lane axis with cheap static VMEM loads and
    # stacked on a leading (head-major) batch axis.
    q3 = jnp.stack([qkv_scr[:, :, h * kd:(h + 1) * kd] for h in range(H)], axis=0)
    k3 = jnp.stack([qkv_scr[:, :, hkd + h * kd:hkd + (h + 1) * kd] for h in range(H)], axis=0)
    v3 = jnp.stack([qkv_scr[:, :, 2 * hkd + h * d:2 * hkd + (h + 1) * d] for h in range(H)], axis=0)
    q3 = q3.reshape(H * Bb, N, kd)
    k3 = k3.reshape(H * Bb, N, kd)
    v3 = v3.reshape(H * Bb, N, d)

    s = jnp.einsum('bqc,bkc->bqk', q3, k3, preferred_element_type=jnp.float32)  # (H*Bb, N, N)
    s = s.reshape(H, Bb, N, N) + ab_ref[...].astype(jnp.float32)[:, None]
    s = s - jnp.max(s, axis=-1, keepdims=True)
    # TODO(synk): on v6e/v7x a bf16 exp (keeping the sum/reciprocal f32) roughly
    # doubles EUP throughput; kept f32 so the same kernel stays accurate on v5e.
    p = jnp.exp(s)
    inv = pl.reciprocal(jnp.sum(p, axis=-1, keepdims=True), approx=True)
    ov = jnp.einsum('bqk,bkc->bqc', p.astype(jnp.bfloat16).reshape(H * Bb, N, N),
                    v3, preferred_element_type=jnp.float32)                  # (H*Bb, N, d)
    ov = (ov * inv.reshape(H * Bb, N, 1)).reshape(H, Bb, N, d)

    # --- Reassemble lane-concatenated head outputs, then ONE output-proj matmul ---
    for h in range(H):
        hcat_scr[:, :, h * d:(h + 1) * d] = ov[h].astype(jnp.bfloat16)
    y = jnp.dot(hcat_scr[...].reshape(Bb * N, hd), wp_ref[...],
                preferred_element_type=jnp.float32) + bp_ref[...]            # (Bb*N, dim)
    o_ref[...] = y.reshape(Bb, N, dim).astype(o_ref.dtype)


def make_attention_bias_idxs(resolution):
    points = list(itertools.product(range(resolution[0]), range(resolution[1])))
    N = len(points)
    attention_offsets = {}
    idxs = []
    for p1 in points:
        for p2 in points:
            offset = (abs(p1[0] - p2[0]), abs(p1[1] - p2[1]))
            if offset not in attention_offsets:
                attention_offsets[offset] = len(attention_offsets)
            idxs.append(attention_offsets[offset])
    return jnp.asarray(idxs, dtype=jnp.int32).reshape(N, N), len(attention_offsets)


def _pick_batch_block(B, N, target_rows=1024):
    """Largest divisor of B with Bb*N <= target_rows, capped so the grid keeps at
    least 2 steps (lets the "parallel" batch axis shard across both TensorCores
    on v7x; on v5e/v6e the extra step only costs ~0.35us of pipeline overhead)."""
    target = max(1, target_rows // max(N, 1))
    if B >= 2:
        target = min(target, max(1, B // 2))
    best = 1
    for cand in range(1, B + 1):
        if B % cand == 0 and cand <= target:
            best = cand
    return best


def attention_forward(x, params, *, num_heads, key_dim, attn_ratio, resolution,
                      batch_block=None):
    B, N, dim = x.shape
    d = int(attn_ratio * key_dim)
    per = 2 * key_dim + d
    h_total = num_heads * per
    hd = num_heads * d
    scale = key_dim ** (-0.5)
    eps = 1e-5

    gamma = params["ln_gamma"].reshape(1, dim).astype(jnp.float32)
    beta = params["ln_beta"].reshape(1, dim).astype(jnp.float32)
    W_qkv, b_qkv = params["W_qkv"], params["b_qkv"]        # (h_total, dim), (h_total,)
    W_proj, b_proj = params["W_proj"], params["b_proj"]    # (dim, hd), (dim,)
    attention_biases = params["attention_biases"]          # (num_heads, n_offsets)

    # --- glue: fused QKV weight, columns = [Q_h0..Q_hH-1 | K_h0.. | V_h0..], bf16,
    #     softmax scale folded into the Q block ---
    Wh = W_qkv.reshape(num_heads, per, dim)                # head-major rows (view+split order)
    bh = b_qkv.reshape(num_heads, per)
    wq_rows = (Wh[:, :key_dim, :] * scale).reshape(num_heads * key_dim, dim)
    wk_rows = Wh[:, key_dim:2 * key_dim, :].reshape(num_heads * key_dim, dim)
    wv_rows = Wh[:, 2 * key_dim:, :].reshape(num_heads * d, dim)
    wqkv = jnp.concatenate([wq_rows, wk_rows, wv_rows], axis=0).T.astype(jnp.bfloat16)  # (dim, h_total)
    bqkv = jnp.concatenate([
        (bh[:, :key_dim] * scale).reshape(-1),
        bh[:, key_dim:2 * key_dim].reshape(-1),
        bh[:, 2 * key_dim:].reshape(-1),
    ]).reshape(1, h_total).astype(jnp.float32)

    # --- glue: output projection as a single (H*d, dim) bf16 matrix (head-major rows,
    #     matching the lane-concatenated head outputs produced in the kernel) ---
    wp = W_proj.T.astype(jnp.bfloat16)                     # (H*d, dim)
    bp = b_proj.reshape(1, dim).astype(jnp.float32)

    # --- glue: gather cached spatial attention bias (== self.ab in eval mode), bf16 ---
    idxs, _ = make_attention_bias_idxs(resolution)
    ab = attention_biases[:, idxs].astype(jnp.bfloat16)    # (H, N, N)

    if batch_block is None:
        batch_block = _pick_batch_block(B, N)
    assert B % batch_block == 0, "batch_block must divide B"
    grid = (B // batch_block,)

    # --- VMEM budget: rough per-step working set, clamped to the chip's capacity ---
    itemsize_out = jnp.dtype(x.dtype).itemsize
    HB = num_heads * batch_block
    est = (
        2 * batch_block * N * dim * (4 + itemsize_out)      # pipelined x / out blocks
        + 2 * (dim * h_total + hd * dim) * 2                # wqkv + wp (bf16, double-buffered)
        + 2 * (h_total + 3 * dim) * 4                       # biases + LN params (f32)
        + 2 * num_heads * N * N * 2                         # spatial bias (bf16)
        + batch_block * N * (h_total + hd) * 2              # qkv / hcat scratch (bf16)
        + batch_block * N * (dim + h_total) * 4             # xn + qkv f32 values
        + 3 * HB * N * N * 4                                # scores / softmax intermediates
        + 2 * HB * N * d * 4                                # PV outputs
    )
    try:
        vmem_cap = int(pltpu.get_tpu_info().vmem_capacity_bytes)
    except Exception:
        vmem_cap = 64 * 1024 * 1024                         # conservative (v7x) fallback
    vmem_limit = int(min(vmem_cap * 3 // 4, max(32 * 1024 * 1024, 2 * est)))

    kernel = functools.partial(attention_kernel, num_heads=num_heads, key_dim=key_dim,
                               d=d, batch_block=batch_block, seq_len=N, dim=dim, eps=eps)

    def full(shape):
        zeros = (0,) * len(shape)
        return pl.BlockSpec(shape, lambda b, zeros=zeros: zeros)

    # TODO(synk): the weight/bias/ab inputs are grid-invariant; once pl.Buffered(1)
    # single-buffering is verified on the target jax version, add
    # pipeline_mode=pl.Buffered(1) to their BlockSpecs to halve their VMEM footprint
    # (matters most on v7x's 64 MiB VMEM).
    return pl.pallas_call(
        kernel,
        out_shape=jax.ShapeDtypeStruct((B, N, dim), x.dtype),
        grid_spec=pltpu.PrefetchScalarGridSpec(
            num_scalar_prefetch=0,
            grid=grid,
            in_specs=[
                pl.BlockSpec((batch_block, N, dim), lambda b: (b, 0, 0)),   # x
                full((1, dim)), full((1, dim)),                             # LN gamma, beta
                full((dim, h_total)), full((1, h_total)),                   # fused Wqkv, bqkv
                full((hd, dim)), full((1, dim)),                            # fused Wproj, bproj
                full((num_heads, N, N)),                                    # spatial bias
            ],
            out_specs=pl.BlockSpec((batch_block, N, dim), lambda b: (b, 0, 0)),
            scratch_shapes=[
                pltpu.VMEM((batch_block, N, h_total), jnp.bfloat16),        # packed qkv
                pltpu.VMEM((batch_block, N, hd), jnp.bfloat16),             # concat head outputs
            ],
        ),
        compiler_params=pltpu.CompilerParams(
            dimension_semantics=("parallel",),   # independent batch blocks -> both TCs on v7x
            vmem_limit_bytes=vmem_limit,
        ),
    )(x, gamma, beta, wqkv, bqkv, wp, bp, ab)


def reference_forward(x, params, *, num_heads, key_dim, attn_ratio, resolution):
    """Pure-JAX (f32) replica of the PyTorch forward for correctness checking."""
    B, N, dim = x.shape
    d = int(attn_ratio * key_dim)
    scale = key_dim ** (-0.5)
    eps = 1e-5
    mean = x.mean(-1, keepdims=True)
    var = ((x - mean) ** 2).mean(-1, keepdims=True)
    xn = (x - mean) / jnp.sqrt(var + eps) * params["ln_gamma"] + params["ln_beta"]
    qkv = xn @ params["W_qkv"].T + params["b_qkv"]
    qkv = qkv.reshape(B, N, num_heads, -1)
    q, k, v = qkv[..., :key_dim], qkv[..., key_dim:2 * key_dim], qkv[..., 2 * key_dim:]
    q, k, v = (t.transpose(0, 2, 1, 3) for t in (q, k, v))
    idxs, _ = make_attention_bias_idxs(resolution)
    ab = params["attention_biases"][:, idxs]
    attn = q @ k.transpose(0, 1, 3, 2) * scale + ab[None]
    attn = jax.nn.softmax(attn, axis=-1)
    out = (attn @ v).transpose(0, 2, 1, 3).reshape(B, N, num_heads * d)
    return out @ params["W_proj"].T + params["b_proj"]


if __name__ == "__main__":
    # Small config consistent with the module: dim=32, key_dim=8, heads=4, attn_ratio=2,
    # resolution=(4,4) -> N=16 tokens, batch B=2.
    dim, key_dim, num_heads, attn_ratio = 32, 8, 4, 2
    resolution = (4, 4)
    B = 2
    N = resolution[0] * resolution[1]
    d = int(attn_ratio * key_dim)
    dh = d * num_heads
    h_total = dh + 2 * key_dim * num_heads

    _, n_offsets = make_attention_bias_idxs(resolution)

    key = jax.random.PRNGKey(0)
    ks = jax.random.split(key, 8)
    params = {
        "ln_gamma": jnp.ones((dim,), jnp.float32),
        "ln_beta": jnp.zeros((dim,), jnp.float32),
        "W_qkv": 0.05 * jax.random.normal(ks[0], (h_total, dim), jnp.float32),
        "b_qkv": 0.05 * jax.random.normal(ks[1], (h_total,), jnp.float32),
        "W_proj": 0.05 * jax.random.normal(ks[2], (dim, dh), jnp.float32),
        "b_proj": 0.05 * jax.random.normal(ks[3], (dim,), jnp.float32),
        # PyTorch initializes these to zero; use small random values for a non-trivial test.
        "attention_biases": 0.1 * jax.random.normal(ks[4], (num_heads, n_offsets), jnp.float32),
    }
    x = jax.random.normal(ks[5], (B, N, dim), jnp.float32)

    out = attention_forward(x, params, num_heads=num_heads, key_dim=key_dim,
                            attn_ratio=attn_ratio, resolution=resolution)
    out = jax.block_until_ready(out)

    ref = reference_forward(x, params, num_heads=num_heads, key_dim=key_dim,
                            attn_ratio=attn_ratio, resolution=resolution)
    assert out.shape == (B, N, dim)
    # bf16 MXU inputs/bias + approximate reciprocal -> loosened tolerance vs f32 reference.
    assert jnp.allclose(out, ref, atol=2e-2, rtol=2e-2), \
        f"max abs diff {jnp.max(jnp.abs(out - ref))}"

    print("KERNEL_OK")
</pallas_src>

<mosaic_0001>
module attributes {stable_mosaic.version = 11 : i64} {
  func.func @attention_kernel(%arg0: i32, %arg1: memref<1x16x32xf32, #tpu.memory_space<vmem>>, %arg2: memref<1x32xf32, #tpu.memory_space<vmem>>, %arg3: memref<1x32xf32, #tpu.memory_space<vmem>>, %arg4: memref<32x128xbf16, #tpu.memory_space<vmem>>, %arg5: memref<1x128xf32, #tpu.memory_space<vmem>>, %arg6: memref<64x32xbf16, #tpu.memory_space<vmem>>, %arg7: memref<1x32xf32, #tpu.memory_space<vmem>>, %arg8: memref<4x16x16xbf16, #tpu.memory_space<vmem>>, %arg9: memref<1x16x32xf32, #tpu.memory_space<vmem>>, %arg10: memref<1x16x128xbf16, #tpu.memory_space<vmem>>, %arg11: memref<1x16x64xbf16, #tpu.memory_space<vmem>>) attributes {dimension_semantics = [#tpu.dimension_semantics<parallel>], iteration_bounds = array<i64: 2>, scalar_prefetch = 0 : i64, scratch_operands = 2 : i64, tpu.core_type = #tpu.core_type<tc>, window_params = [{transform_indices = @transform_0, window_bounds = array<i64: 1, 16, 32>}, {pipeline_mode = #tpu.pipeline_mode<synchronous>, transform_indices = @transform_1, window_bounds = array<i64: 1, 32>}, {pipeline_mode = #tpu.pipeline_mode<synchronous>, transform_indices = @transform_2, window_bounds = array<i64: 1, 32>}, {pipeline_mode = #tpu.pipeline_mode<synchronous>, transform_indices = @transform_3, window_bounds = array<i64: 32, 128>}, {pipeline_mode = #tpu.pipeline_mode<synchronous>, transform_indices = @transform_4, window_bounds = array<i64: 1, 128>}, {pipeline_mode = #tpu.pipeline_mode<synchronous>, transform_indices = @transform_5, window_bounds = array<i64: 64, 32>}, {pipeline_mode = #tpu.pipeline_mode<synchronous>, transform_indices = @transform_6, window_bounds = array<i64: 1, 32>}, {pipeline_mode = #tpu.pipeline_mode<synchronous>, transform_indices = @transform_7, window_bounds = array<i64: 4, 16, 16>}, {transform_indices = @transform_8, window_bounds = array<i64: 1, 16, 32>}]} {
    %c0 = arith.constant 0 : index
    %c0_0 = arith.constant 0 : index
    %c0_1 = arith.constant 0 : index
    %0 = vector.load %arg1[%c0, %c0_0, %c0_1] : memref<1x16x32xf32, #tpu.memory_space<vmem>>, vector<1x16x32xf32>
    %1 = vector.shape_cast %0 : vector<1x16x32xf32> to vector<16x32xf32>
    %cst = arith.constant dense<0.000000e+00> : vector<16xf32>
    %2 = vector.multi_reduction <add>, %1, %cst [1] : vector<16x32xf32> to vector<16xf32>
    %3 = vector.shape_cast %2 : vector<16xf32> to vector<16x1xf32>
    %cst_2 = arith.constant 3.200000e+01 : f32
    %4 = vector.broadcast %cst_2 : f32 to vector<16x1xf32>
    %5 = arith.divf %3, %4 : vector<16x1xf32>
    %6 = vector.broadcast %5 : vector<16x1xf32> to vector<16x32xf32>
    %7 = arith.subf %1, %6 : vector<16x32xf32>
    %8 = arith.mulf %7, %7 : vector<16x32xf32>
    %cst_3 = arith.constant dense<0.000000e+00> : vector<16xf32>
    %9 = vector.multi_reduction <add>, %8, %cst_3 [1] : vector<16x32xf32> to vector<16xf32>
    %10 = vector.shape_cast %9 : vector<16xf32> to vector<16x1xf32>
    %cst_4 = arith.constant 3.200000e+01 : f32
    %11 = vector.broadcast %cst_4 : f32 to vector<16x1xf32>
    %12 = arith.divf %10, %11 : vector<16x1xf32>
    %cst_5 = arith.constant 9.99999974E-6 : f32
    %13 = vector.broadcast %cst_5 : f32 to vector<16x1xf32>
    %14 = arith.addf %12, %13 : vector<16x1xf32>
    %15 = math.rsqrt %14 : vector<16x1xf32>
    %16 = vector.broadcast %15 : vector<16x1xf32> to vector<16x32xf32>
    %17 = arith.mulf %7, %16 : vector<16x32xf32>
    %c0_6 = arith.constant 0 : index
    %c0_7 = arith.constant 0 : index
    %18 = vector.load %arg2[%c0_6, %c0_7] : memref<1x32xf32, #tpu.memory_space<vmem>>, vector<1x32xf32>
    %19 = vector.broadcast %18 : vector<1x32xf32> to vector<16x32xf32>
    %20 = arith.mulf %17, %19 : vector<16x32xf32>
    %c0_8 = arith.constant 0 : index
    %c0_9 = arith.constant 0 : index
    %21 = vector.load %arg3[%c0_8, %c0_9] : memref<1x32xf32, #tpu.memory_space<vmem>>, vector<1x32xf32>
    %22 = vector.broadcast %21 : vector<1x32xf32> to vector<16x32xf32>
    %23 = arith.addf %20, %22 : vector<16x32xf32>
    %24 = arith.truncf %23 : vector<16x32xf32> to vector<16x32xbf16>
    %c0_10 = arith.constant 0 : index
    %c0_11 = arith.constant 0 : index
    %25 = vector.load %arg4[%c0_10, %c0_11] : memref<32x128xbf16, #tpu.memory_space<vmem>>, vector<32x128xbf16>
    %cst_12 = arith.constant dense<0.000000e+00> : vector<16x128xf32>
    %26 = tpu.matmul %24, %25, %cst_12 {dimension_numbers = #tpu.dot_dimension_numbers<[1], [0], [0], [1], [0, 0, 1, 1], [], []>} : vector<16x32xbf16>, vector<32x128xbf16>, vector<16x128xf32> -> vector<16x128xf32>
    %c0_13 = arith.constant 0 : index
    %c0_14 = arith.constant 0 : index
    %27 = vector.load %arg5[%c0_13, %c0_14] : memref<1x128xf32, #tpu.memory_space<vmem>>, vector<1x128xf32>
    %28 = vector.broadcast %27 : vector<1x128xf32> to vector<16x128xf32>
    %29 = arith.addf %26, %28 : vector<16x128xf32>
    %30 = vector.shape_cast %29 : vector<16x128xf32> to vector<1x16x128xf32>
    %31 = arith.truncf %30 : vector<1x16x128xf32> to vector<1x16x128xbf16>
    %c0_15 = arith.constant 0 : index
    %c0_16 = arith.constant 0 : index
    %c0_17 = arith.constant 0 : index
    %32 = vector.load %arg10[%c0_15, %c0_16, %c0_17] : memref<1x16x128xbf16, #tpu.memory_space<vmem>>, vector<1x16x128xbf16>
    tpu.vector_store %arg10[%c0_15, %c0_16, %c0_17], %31 {strides = array<i32>} : memref<1x16x128xbf16, #tpu.memory_space<vmem>>, vector<1x16x128xbf16>,
    %c0_18 = arith.constant 0 : index
    %c0_19 = arith.constant 0 : index
    %c0_20 = arith.constant 0 : index
    %33 = vector.load %arg10[%c0_18, %c0_19, %c0_20] : memref<1x16x128xbf16, #tpu.memory_space<vmem>>, vector<1x16x8xbf16>
    %c0_21 = arith.constant 0 : index
    %c0_22 = arith.constant 0 : index
    %c8 = arith.constant 8 : index
    %34 = vector.load %arg10[%c0_21, %c0_22, %c8] : memref<1x16x128xbf16, #tpu.memory_space<vmem>>, vector<1x16x8xbf16>
    %c0_23 = arith.constant 0 : index
    %c0_24 = arith.constant 0 : index
    %c16 = arith.constant 16 : index
    %35 = vector.load %arg10[%c0_23, %c0_24, %c16] : memref<1x16x128xbf16, #tpu.memory_space<vmem>>, vector<1x16x8xbf16>
    %c0_25 = arith.constant 0 : index
    %c0_26 = arith.constant 0 : index
    %c24 = arith.constant 24 : index
    %36 = vector.load %arg10[%c0_25, %c0_26, %c24] : memref<1x16x128xbf16, #tpu.memory_space<vmem>>, vector<1x16x8xbf16>
    %37 = vector.shape_cast %33 : vector<1x16x8xbf16> to vector<1x1x16x8xbf16>
    %38 = vector.shape_cast %34 : vector<1x16x8xbf16> to vector<1x1x16x8xbf16>
    %39 = vector.shape_cast %35 : vector<1x16x8xbf16> to vector<1x1x16x8xbf16>
    %40 = vector.shape_cast %36 : vector<1x16x8xbf16> to vector<1x1x16x8xbf16>
    %41 = tpu.concatenate %37, %38, %39, %40 in 0 : vector<1x1x16x8xbf16>, vector<1x1x16x8xbf16>, vector<1x1x16x8xbf16>, vector<1x1x16x8xbf16> -> vector<4x1x16x8xbf16>
    %c0_27 = arith.constant 0 : index
    %c0_28 = arith.constant 0 : index
    %c32 = arith.constant 32 : index
    %42 = vector.load %arg10[%c0_27, %c0_28, %c32] : memref<1x16x128xbf16, #tpu.memory_space<vmem>>, vector<1x16x8xbf16>
    %c0_29 = arith.constant 0 : index
    %c0_30 = arith.constant 0 : index
    %c40 = arith.constant 40 : index
    %43 = vector.load %arg10[%c0_29, %c0_30, %c40] : memref<1x16x128xbf16, #tpu.memory_space<vmem>>, vector<1x16x8xbf16>
    %c0_31 = arith.constant 0 : index
    %c0_32 = arith.constant 0 : index
    %c48 = arith.constant 48 : index
    %44 = vector.load %arg10[%c0_31, %c0_32, %c48] : memref<1x16x128xbf16, #tpu.memory_space<vmem>>, vector<1x16x8xbf16>
    %c0_33 = arith.constant 0 : index
    %c0_34 = arith.constant 0 : index
    %c56 = arith.constant 56 : index
    %45 = vector.load %arg10[%c0_33, %c0_34, %c56] : memref<1x16x128xbf16, #tpu.memory_space<vmem>>, vector<1x16x8xbf16>
    %46 = vector.shape_cast %42 : vector<1x16x8xbf16> to vector<1x1x16x8xbf16>
    %47 = vector.shape_cast %43 : vector<1x16x8xbf16> to vector<1x1x16x8xbf16>
    %48 = vector.shape_cast %44 : vector<1x16x8xbf16> to vector<1x1x16x8xbf16>
    %49 = vector.shape_cast %45 : vector<1x16x8xbf16> to vector<1x1x16x8xbf16>
    %50 = tpu.concatenate %46, %47, %48, %49 in 0 : vector<1x1x16x8xbf16>, vector<1x1x16x8xbf16>, vector<1x1x16x8xbf16>, vector<1x1x16x8xbf16> -> vector<4x1x16x8xbf16>
    %c0_35 = arith.constant 0 : index
    %c0_36 = arith.constant 0 : index
    %c64 = arith.constant 64 : index
    %51 = vector.load %arg10[%c0_35, %c0_36, %c64] : memref<1x16x128xbf16, #tpu.memory_space<vmem>>, vector<1x16x16xbf16>
    %c0_37 = arith.constant 0 : index
    %c0_38 = arith.constant 0 : index
    %c80 = arith.constant 80 : index
    %52 = vector.load %arg10[%c0_37, %c0_38, %c80] : memref<1x16x128xbf16, #tpu.memory_space<vmem>>, vector<1x16x16xbf16>
    %c0_39 = arith.constant 0 : index
    %c0_40 = arith.constant 0 : index
    %c96 = arith.constant 96 : index
    %53 = vector.load %arg10[%c0_39, %c0_40, %c96] : memref<1x16x128xbf16, #tpu.memory_space<vmem>>, vector<1x16x16xbf16>
    %c0_41 = arith.constant 0 : index
    %c0_42 = arith.constant 0 : index
    %c112 = arith.constant 112 : index
    %54 = vector.load %arg10[%c0_41, %c0_42, %c112] : memref<1x16x128xbf16, #tpu.memory_space<vmem>>, vector<1x16x16xbf16>
    %55 = vector.shape_cast %51 : vector<1x16x16xbf16> to vector<1x1x16x16xbf16>
    %56 = vector.shape_cast %52 : vector<1x16x16xbf16> to vector<1x1x16x16xbf16>
    %57 = vector.shape_cast %53 : vector<1x16x16xbf16> to vector<1x1x16x16xbf16>
    %58 = vector.shape_cast %54 : vector<1x16x16xbf16> to vector<1x1x16x16xbf16>
    %59 = tpu.concatenate %55, %56, %57, %58 in 0 : vector<1x1x16x16xbf16>, vector<1x1x16x16xbf16>, vector<1x1x16x16xbf16>, vector<1x1x16x16xbf16> -> vector<4x1x16x16xbf16>
    %60 = vector.shape_cast %41 : vector<4x1x16x8xbf16> to vector<4x16x8xbf16>
    %61 = vector.shape_cast %50 : vector<4x1x16x8xbf16> to vector<4x16x8xbf16>
    %62 = vector.shape_cast %59 : vector<4x1x16x16xbf16> to vector<4x16x16xbf16>
    "tpu.trace_start"() <{level = 10 : i32, message = "bqc,bkc->bqk"}> : () -> ()
    %cst_43 = arith.constant dense<0.000000e+00> : vector<4x16x16xf32>
    %63 = tpu.matmul %60, %61, %cst_43 {dimension_numbers = #tpu.dot_dimension_numbers<[2], [2], [1], [1], [0, 0, 0, 1, 1, 1], [0], [0]>} : vector<4x16x8xbf16>, vector<4x16x8xbf16>, vector<4x16x16xf32> -> vector<4x16x16xf32>
    "tpu.trace_stop"() : () -> ()
    %64 = vector.shape_cast %63 : vector<4x16x16xf32> to vector<4x1x16x16xf32>
    %c0_44 = arith.constant 0 : index
    %c0_45 = arith.constant 0 : index
    %c0_46 = arith.constant 0 : index
    %65 = vector.load %arg8[%c0_44, %c0_45, %c0_46] : memref<4x16x16xbf16, #tpu.memory_space<vmem>>, vector<4x16x16xbf16>
    %66 = arith.extf %65 : vector<4x16x16xbf16> to vector<4x16x16xf32>
    %67 = vector.shape_cast %66 : vector<4x16x16xf32> to vector<4x1x16x16xf32>
    %68 = arith.addf %64, %67 : vector<4x1x16x16xf32>
    %cst_47 = arith.constant dense<0xFF800000> : vector<4x1x16xf32>
    %69 = vector.multi_reduction <maximumf>, %68, %cst_47 [3] : vector<4x1x16x16xf32> to vector<4x1x16xf32>
    %70 = vector.shape_cast %69 : vector<4x1x16xf32> to vector<4x1x16x1xf32>
    %71 = vector.broadcast %70 : vector<4x1x16x1xf32> to vector<4x1x16x16xf32>
    %72 = arith.subf %68, %71 : vector<4x1x16x16xf32>
    %73 = math.exp %72 : vector<4x1x16x16xf32>
    %cst_48 = arith.constant dense<0.000000e+00> : vector<4x1x16xf32>
    %74 = vector.multi_reduction <add>, %73, %cst_48 [3] : vector<4x1x16x16xf32> to vector<4x1x16xf32>
    %75 = vector.shape_cast %74 : vector<4x1x16xf32> to vector<4x1x16x1xf32>
    %76 = tpu.reciprocal %75 {approx = true} : vector<4x1x16x1xf32> -> vector<4x1x16x1xf32>
    %77 = arith.truncf %73 : vector<4x1x16x16xf32> to vector<4x1x16x16xbf16>
    %78 = vector.shape_cast %77 : vector<4x1x16x16xbf16> to vector<4x16x16xbf16>
    "tpu.trace_start"() <{level = 10 : i32, message = "bqk,bkc->bqc"}> : () -> ()
    %cst_49 = arith.constant dense<0.000000e+00> : vector<4x16x16xf32>
    %79 = tpu.matmul %78, %62, %cst_49 {dimension_numbers = #tpu.dot_dimension_numbers<[2], [1], [1], [2], [0, 0, 0, 1, 1, 2], [0], [0]>} : vector<4x16x16xbf16>, vector<4x16x16xbf16>, vector<4x16x16xf32> -> vector<4x16x16xf32>
    "tpu.trace_stop"() : () -> ()
    %80 = vector.shape_cast %76 : vector<4x1x16x1xf32> to vector<4x16x1xf32>
    %81 = vector.broadcast %80 : vector<4x16x1xf32> to vector<4x16x16xf32>
    %82 = arith.mulf %79, %81 : vector<4x16x16xf32>
    %83 = vector.shape_cast %82 : vector<4x16x16xf32> to vector<4x1x16x16xf32>
    %84 = vector.extract_strided_slice %83 {offsets = [0, 0, 0, 0], sizes = [1, 1, 16, 16], strides = [1, 1, 1, 1]} : vector<4x1x16x16xf32> to vector<1x1x16x16xf32>
    %85 = vector.shape_cast %84 : vector<1x1x16x16xf32> to vector<1x16x16xf32>
    %86 = arith.truncf %85 : vector<1x16x16xf32> to vector<1x16x16xbf16>
    %c0_50 = arith.constant 0 : index
    %c0_51 = arith.constant 0 : index
    %c0_52 = arith.constant 0 : index
    %87 = vector.load %arg11[%c0_50, %c0_51, %c0_52] : memref<1x16x64xbf16, #tpu.memory_space<vmem>>, vector<1x16x16xbf16>
    tpu.vector_store %arg11[%c0_50, %c0_51, %c0_52], %86 {strides = array<i32>} : memref<1x16x64xbf16, #tpu.memory_space<vmem>>, vector<1x16x16xbf16>,
    %88 = vector.extract_strided_slice %83 {offsets = [1, 0, 0, 0], sizes = [1, 1, 16, 16], strides = [1, 1, 1, 1]} : vector<4x1x16x16xf32> to vector<1x1x16x16xf32>
    %89 = vector.shape_cast %88 : vector<1x1x16x16xf32> to vector<1x16x16xf32>
    %90 = arith.truncf %89 : vector<1x16x16xf32> to vector<1x16x16xbf16>
    %c0_53 = arith.constant 0 : index
    %c0_54 = arith.constant 0 : index
    %c16_55 = arith.constant 16 : index
    %91 = vector.load %arg11[%c0_53, %c0_54, %c16_55] : memref<1x16x64xbf16, #tpu.memory_space<vmem>>, vector<1x16x16xbf16>
    tpu.vector_store %arg11[%c0_53, %c0_54, %c16_55], %90 {strides = array<i32>} : memref<1x16x64xbf16, #tpu.memory_space<vmem>>, vector<1x16x16xbf16>,
    %92 = vector.extract_strided_slice %83 {offsets = [2, 0, 0, 0], sizes = [1, 1, 16, 16], strides = [1, 1, 1, 1]} : vector<4x1x16x16xf32> to vector<1x1x16x16xf32>
    %93 = vector.shape_cast %92 : vector<1x1x16x16xf32> to vector<1x16x16xf32>
    %94 = arith.truncf %93 : vector<1x16x16xf32> to vector<1x16x16xbf16>
    %c0_56 = arith.constant 0 : index
    %c0_57 = arith.constant 0 : index
    %c32_58 = arith.constant 32 : index
    %95 = vector.load %arg11[%c0_56, %c0_57, %c32_58] : memref<1x16x64xbf16, #tpu.memory_space<vmem>>, vector<1x16x16xbf16>
    tpu.vector_store %arg11[%c0_56, %c0_57, %c32_58], %94 {strides = array<i32>} : memref<1x16x64xbf16, #tpu.memory_space<vmem>>, vector<1x16x16xbf16>,
    %96 = vector.extract_strided_slice %83 {offsets = [3, 0, 0, 0], sizes = [1, 1, 16, 16], strides = [1, 1, 1, 1]} : vector<4x1x16x16xf32> to vector<1x1x16x16xf32>
    %97 = vector.shape_cast %96 : vector<1x1x16x16xf32> to vector<1x16x16xf32>
    %98 = arith.truncf %97 : vector<1x16x16xf32> to vector<1x16x16xbf16>
    %c0_59 = arith.constant 0 : index
    %c0_60 = arith.constant 0 : index
    %c48_61 = arith.constant 48 : index
    %99 = vector.load %arg11[%c0_59, %c0_60, %c48_61] : memref<1x16x64xbf16, #tpu.memory_space<vmem>>, vector<1x16x16xbf16>
    tpu.vector_store %arg11[%c0_59, %c0_60, %c48_61], %98 {strides = array<i32>} : memref<1x16x64xbf16, #tpu.memory_space<vmem>>, vector<1x16x16xbf16>,
    %c0_62 = arith.constant 0 : index
    %c0_63 = arith.constant 0 : index
    %c0_64 = arith.constant 0 : index
    %100 = vector.load %arg11[%c0_62, %c0_63, %c0_64] : memref<1x16x64xbf16, #tpu.memory_space<vmem>>, vector<1x16x64xbf16>
    %101 = vector.shape_cast %100 : vector<1x16x64xbf16> to vector<16x64xbf16>
    %c0_65 = arith.constant 0 : index
    %c0_66 = arith.constant 0 : index
    %102 = vector.load %arg6[%c0_65, %c0_66] : memref<64x32xbf16, #tpu.memory_space<vmem>>, vector<64x32xbf16>
    %cst_67 = arith.constant dense<0.000000e+00> : vector<16x32xf32>
    %103 = tpu.matmul %101, %102, %cst_67 {dimension_numbers = #tpu.dot_dimension_numbers<[1], [0], [0], [1], [0, 0, 1, 1], [], []>} : vector<16x64xbf16>, vector<64x32xbf16>, vector<16x32xf32> -> vector<16x32xf32>
    %c0_68 = arith.constant 0 : index
    %c0_69 = arith.constant 0 : index
    %104 = vector.load %arg7[%c0_68, %c0_69] : memref<1x32xf32, #tpu.memory_space<vmem>>, vector<1x32xf32>
    %105 = vector.broadcast %104 : vector<1x32xf32> to vector<16x32xf32>
    %106 = arith.addf %103, %105 : vector<16x32xf32>
    %107 = vector.shape_cast %106 : vector<16x32xf32> to vector<1x16x32xf32>
    %c0_70 = arith.constant 0 : index
    %c0_71 = arith.constant 0 : index
    %c0_72 = arith.constant 0 : index
    %108 = vector.load %arg9[%c0_70, %c0_71, %c0_72] : memref<1x16x32xf32, #tpu.memory_space<vmem>>, vector<1x16x32xf32>
    tpu.vector_store %arg9[%c0_70, %c0_71, %c0_72], %107 {strides = array<i32>} : memref<1x16x32xf32, #tpu.memory_space<vmem>>, vector<1x16x32xf32>,
    return
  }
  func.func @transform_0(%arg0: i32) -> (i32, i32, i32) {
    %c0_i32 = arith.constant 0 : i32
    %c0_i32_0 = arith.constant 0 : i32
    %c0_i32_1 = arith.constant 0 : i32
    return %arg0, %c0_i32, %c0_i32_0 : i32, i32, i32
  }
  func.func @transform_1(%arg0: i32) -> (i32, i32) {
    %c0_i32 = arith.constant 0 : i32
    %c0_i32_0 = arith.constant 0 : i32
    %c0_i32_1 = arith.constant 0 : i32
    return %c0_i32, %c0_i32_0 : i32, i32
  }
  func.func @transform_2(%arg0: i32) -> (i32, i32) {
    %c0_i32 = arith.constant 0 : i32
    %c0_i32_0 = arith.constant 0 : i32
    %c0_i32_1 = arith.constant 0 : i32
    return %c0_i32, %c0_i32_0 : i32, i32
  }
  func.func @transform_3(%arg0: i32) -> (i32, i32) {
    %c0_i32 = arith.constant 0 : i32
    %c0_i32_0 = arith.constant 0 : i32
    %c0_i32_1 = arith.constant 0 : i32
    return %c0_i32, %c0_i32_0 : i32, i32
  }
  func.func @transform_4(%arg0: i32) -> (i32, i32) {
    %c0_i32 = arith.constant 0 : i32
    %c0_i32_0 = arith.constant 0 : i32
    %c0_i32_1 = arith.constant 0 : i32
    return %c0_i32, %c0_i32_0 : i32, i32
  }
  func.func @transform_5(%arg0: i32) -> (i32, i32) {
    %c0_i32 = arith.constant 0 : i32
    %c0_i32_0 = arith.constant 0 : i32
    %c0_i32_1 = arith.constant 0 : i32
    return %c0_i32, %c0_i32_0 : i32, i32
  }
  func.func @transform_6(%arg0: i32) -> (i32, i32) {
    %c0_i32 = arith.constant 0 : i32
    %c0_i32_0 = arith.constant 0 : i32
    %c0_i32_1 = arith.constant 0 : i32
    return %c0_i32, %c0_i32_0 : i32, i32
  }
  func.func @transform_7(%arg0: i32) -> (i32, i32, i32) {
    %c0_i32 = arith.constant 0 : i32
    %c0_i32_0 = arith.constant 0 : i32
    %c0_i32_1 = arith.constant 0 : i32
    %c0_i32_2 = arith.constant 0 : i32
    return %c0_i32, %c0_i32_0, %c0_i32_1 : i32, i32, i32
  }
  func.func @transform_8(%arg0: i32) -> (i32, i32, i32) {
    %c0_i32 = arith.constant 0 : i32
    %c0_i32_0 = arith.constant 0 : i32
    %c0_i32_1 = arith.constant 0 : i32
    return %arg0, %c0_i32, %c0_i32_0 : i32, i32, i32
  }
}

</mosaic_0001>

<llo_original>
// kernel: tpu_custom_call.1
$region0: #{tpu_custom_call.1}
  #allocation0 [shape = 'u32[]', space=smem, size = 0x4, offset = 0x4, fixed_abs, tag = 'smem constant byte address 0x4 - core index']
  #allocation1 [shape = 'u32[144,128]{1,0:T(1,128)}', space=vmem, size = 0x12000, scoped, tag = 'internal scratch']
  #allocation2 [shape = 'bf16[1,16,128]{2,1,0:T(16,128)(2,1)}', space=vmem, size = 0x1000, scoped, tag = 'scratch operand']
  #allocation3 [shape = 'bf16[1,16,64]{2,1,0:T(16,128)(2,1)}', space=vmem, size = 0x1000, scoped, tag = 'scratch operand']
  %s0 = inlined_call_operand.vmem [shape: f32[2,16,32], index: 0, kind: input, shape index: {}]
  %s1 = inlined_call_operand.vmem [shape: f32[1,32], index: 1, kind: input, shape index: {}]
  %s2 = inlined_call_operand.vmem [shape: f32[1,32], index: 2, kind: input, shape index: {}]
  %s3 = inlined_call_operand.hbm [shape: bf16[32,128], index: 3, kind: input, shape index: {}]
  %s4 = inlined_call_operand.hbm [shape: f32[1,128], index: 4, kind: input, shape index: {}]
  %s5 = inlined_call_operand.vmem [shape: bf16[64,32], index: 5, kind: input, shape index: {}]
  %s6 = inlined_call_operand.vmem [shape: f32[1,32], index: 6, kind: input, shape index: {}]
  %s7 = inlined_call_operand.vmem [shape: bf16[4,16,16], index: 7, kind: input, shape index: {}]
  %s8 = inlined_call_operand.hbm [shape: f32[2,16,32], index: 8, kind: output, shape index: {}]
  %s9 = sld [smem:[#allocation0]]
  $region73: #{tpu_custom_call.1} parent=0
    _
  %s11 = ssub.s32 1, %s9
  %s12 = scalar_select 0, %s11, %s9
  $region1: #{tpu_custom_call.1} parent=0
    #allocation4 [shape = 'u8[8192]{0}', space=vmem, size = 0x2000, scoped, tag = 'input window, operand 3, single buffered']
    #allocation5 [shape = 's32[2]{0}', space=sflag, size = 0x8, scoped, tag = 'scoped memory for tpu_custom_call.1']
    #allocation6 [shape = 's32[2]{0}', space=sflag, size = 0x8, scoped, tag = 'scoped memory for tpu_custom_call.1']
    #allocation7 [shape = 'u8[512]{0}', space=vmem, size = 0x400, scoped, tag = 'input window, operand 4, single buffered']
    #allocation8 [shape = 's32[1]{0}', space=sflag, size = 0x4, scoped, tag = 'scoped memory for tpu_custom_call.1']
    #allocation9 [shape = 'u8[16384]{0}', space=vmem, size = 0x4000, scoped, tag = 'output window, operand 0']
    %13 = vsyncpa [#allocation5], 0
    %14 = vsyncpa [#allocation8], 0
    %15 = vsyncpa [#allocation6], 0
    %s16 = scalar_lea.sflag [#allocation6], 1
    %17 = vsyncpa %s16, 0
    loop: start=0, step=1, limit=4
    $region2: #{tpu_custom_call.1} parent=1 // loop_pre_header
      _
    $region3: #{tpu_custom_call.1} parent=1 // loop_header
      %s19 = sphi 0, %s23
      %p20 = scmp.ge.s32.totalorder %s19, 4
      %s29 = sphi 0, %s31
      %s32 = sphi 0, %s29
      %s33 = sphi 0, %s32
      %s49 = sphi 0, %s33
      %s53 = sphi 0, %s53
      %s55 = sphi 0, %s53
      %s56 = sphi 0, %s55
      %s70 = sphi 0, %s56
      %s74 = sphi 0, %s74
      %s76 = sphi 0, %s74
      %s77 = sphi 0, %s76
      %s91 = sphi 0, %s77
      %s95 = sphi 0, %s95
      %s97 = sphi 0, %s95
      %s98 = sphi 0, %s97
      %s112 = sphi 0, %s98
      %s116 = sphi 0, %s116
      %s118 = sphi 0, %s116
      %s119 = sphi 0, %s118
      %s133 = sphi 0, %s119
      %s137 = sphi 0, %s137
      %s139 = sphi 0, %s137
      %s140 = sphi 0, %s139
      %s154 = sphi 0, %s140
      %s158 = sphi 0, %s158
      %s160 = sphi 0, %s158
      %s161 = sphi 0, %s160
      %s175 = sphi 0, %s161
      %s179 = sphi 0, %s179
      %s181 = sphi 0, %s179
      %s182 = sphi 0, %s181
      %s196 = sphi 0, %s182
      %s202 = sphi 0, %s204
      %s205 = sphi 0, %s202
      %s206 = sphi 0, %s205
      %s222 = sphi 0, %s206
    $region4: #{tpu_custom_call.1} parent=1 // loop_header_branch
      %22 = sbr.rel (%p20) target = $region8
    $region5: #{tpu_custom_call.1} parent=1 // loop_body
      %s24 = ssub.s32 %s19, 1
      %s25 = ssub.s32 %s19, 2
      %s26 = sadd.s32 %s19, 1
      %s27 = ssub.s32 %s19, %s26
      %p28 = scmp.eq.s32.totalorder %s27, 0
      %s30 = sadd.s32 %s29, 1
      %s31 = scalar_select %p28, %s29, %s30
      %p34 = pneg %p28
      %p35 = scmp.eq.s32.totalorder %s19, 1
      %p36 = por %p34, %p35
      %p37 = scmp.ne.s32.totalorder %s29, %s32
      %p38 = scmp.eq.s32.totalorder %s19, 0
      %p39 = por %p37, %p38
      %p40 = scmp.ne.s32.totalorder %s29, %s32
      %p41 = scmp.eq.s32.totalorder %s24, 1
      %p42 = por %p40, %p41
      %p43 = scmp.ne.s32.totalorder %s32, %s33
      %p44 = scmp.eq.s32.totalorder %s24, 0
      %p45 = por %p43, %p44
      %p46 = scmp.ne.s32.totalorder %s32, %s33
      %p47 = scmp.eq.s32.totalorder %s25, 1
      %p48 = por %p46, %p47
      %p50 = scmp.ne.s32.totalorder %s33, %s49
      %p51 = scmp.eq.s32.totalorder %s25, 0
      %p52 = por %p50, %p51
      %s54 = sadd.s32 %s53, 1
      %p57 = scmp.eq.s32.totalorder %s19, 1
      %p58 = scmp.ne.s32.totalorder %s53, %s55
      %p59 = scmp.eq.s32.totalorder %s19, 0
      %p60 = por %p58, %p59
      %p61 = scmp.ne.s32.totalorder %s53, %s55
      %p62 = scmp.eq.s32.totalorder %s24, 1
      %p63 = por %p61, %p62
      %p64 = scmp.ne.s32.totalorder %s55, %s56
      %p65 = scmp.eq.s32.totalorder %s24, 0
      %p66 = por %p64, %p65
      %p67 = scmp.ne.s32.totalorder %s55, %s56
      %p68 = scmp.eq.s32.totalorder %s25, 1
      %p69 = por %p67, %p68
      %p71 = scmp.ne.s32.totalorder %s56, %s70
      %p72 = scmp.eq.s32.totalorder %s25, 0
      %p73 = por %p71, %p72
      %s75 = sadd.s32 %s74, 1
      %p78 = scmp.eq.s32.totalorder %s19, 1
      %p79 = scmp.ne.s32.totalorder %s74, %s76
      %p80 = scmp.eq.s32.totalorder %s19, 0
      %p81 = por %p79, %p80
      %p82 = scmp.ne.s32.totalorder %s74, %s76
      %p83 = scmp.eq.s32.totalorder %s24, 1
      %p84 = por %p82, %p83
      %p85 = scmp.ne.s32.totalorder %s76, %s77
      %p86 = scmp.eq.s32.totalorder %s24, 0
      %p87 = por %p85, %p86
      %p88 = scmp.ne.s32.totalorder %s76, %s77
      %p89 = scmp.eq.s32.totalorder %s25, 1
      %p90 = por %p88, %p89
      %p92 = scmp.ne.s32.totalorder %s77, %s91
      %p93 = scmp.eq.s32.totalorder %s25, 0
      %p94 = por %p92, %p93
      %s96 = sadd.s32 %s95, 1
      %p99 = scmp.eq.s32.totalorder %s19, 1
      %p100 = scmp.ne.s32.totalorder %s95, %s97
      %p101 = scmp.eq.s32.totalorder %s19, 0
      %p102 = por %p100, %p101
      %p103 = scmp.ne.s32.totalorder %s95, %s97
      %p104 = scmp.eq.s32.totalorder %s24, 1
      %p105 = por %p103, %p104
      %p106 = scmp.ne.s32.totalorder %s97, %s98
      %p107 = scmp.eq.s32.totalorder %s24, 0
      %p108 = por %p106, %p107
      %p109 = scmp.ne.s32.totalorder %s97, %s98
      %p110 = scmp.eq.s32.totalorder %s25, 1
      %p111 = por %p109, %p110
      %p113 = scmp.ne.s32.totalorder %s98, %s112
      %p114 = scmp.eq.s32.totalorder %s25, 0
      %p115 = por %p113, %p114
      %s117 = sadd.s32 %s116, 1
      %p120 = scmp.eq.s32.totalorder %s19, 1
      %p121 = scmp.ne.s32.totalorder %s116, %s118
      %p122 = scmp.eq.s32.totalorder %s19, 0
      %p123 = por %p121, %p122
      %p124 = scmp.ne.s32.totalorder %s116, %s118
      %p125 = scmp.eq.s32.totalorder %s24, 1
      %p126 = por %p124, %p125
      %p127 = scmp.ne.s32.totalorder %s118, %s119
      %p128 = scmp.eq.s32.totalorder %s24, 0
      %p129 = por %p127, %p128
      %p130 = scmp.ne.s32.totalorder %s118, %s119
      %p131 = scmp.eq.s32.totalorder %s25, 1
      %p132 = por %p130, %p131
      %p134 = scmp.ne.s32.totalorder %s119, %s133
      %p135 = scmp.eq.s32.totalorder %s25, 0
      %p136 = por %p134, %p135
      %s138 = sadd.s32 %s137, 1
      %p141 = scmp.eq.s32.totalorder %s19, 1
      %p142 = scmp.ne.s32.totalorder %s137, %s139
      %p143 = scmp.eq.s32.totalorder %s19, 0
      %p144 = por %p142, %p143
      %p145 = scmp.ne.s32.totalorder %s137, %s139
      %p146 = scmp.eq.s32.totalorder %s24, 1
      %p147 = por %p145, %p146
      %p148 = scmp.ne.s32.totalorder %s139, %s140
      %p149 = scmp.eq.s32.totalorder %s24, 0
      %p150 = por %p148, %p149
      %p151 = scmp.ne.s32.totalorder %s139, %s140
      %p152 = scmp.eq.s32.totalorder %s25, 1
      %p153 = por %p151, %p152
      %p155 = scmp.ne.s32.totalorder %s140, %s154
      %p156 = scmp.eq.s32.totalorder %s25, 0
      %p157 = por %p155, %p156
      %s159 = sadd.s32 %s158, 1
      %p162 = scmp.eq.s32.totalorder %s19, 1
      %p163 = scmp.ne.s32.totalorder %s158, %s160
      %p164 = scmp.eq.s32.totalorder %s19, 0
      %p165 = por %p163, %p164
      %p166 = scmp.ne.s32.totalorder %s158, %s160
      %p167 = scmp.eq.s32.totalorder %s24, 1
      %p168 = por %p166, %p167
      %p169 = scmp.ne.s32.totalorder %s160, %s161
      %p170 = scmp.eq.s32.totalorder %s24, 0
      %p171 = por %p169, %p170
      %p172 = scmp.ne.s32.totalorder %s160, %s161
      %p173 = scmp.eq.s32.totalorder %s25, 1
      %p174 = por %p172, %p173
      %p176 = scmp.ne.s32.totalorder %s161, %s175
      %p177 = scmp.eq.s32.totalorder %s25, 0
      %p178 = por %p176, %p177
      %s180 = sadd.s32 %s179, 1
      %p183 = scmp.eq.s32.totalorder %s19, 1
      %p184 = scmp.ne.s32.totalorder %s179, %s181
      %p185 = scmp.eq.s32.totalorder %s19, 0
      %p186 = por %p184, %p185
      %p187 = scmp.ne.s32.totalorder %s179, %s181
      %p188 = scmp.eq.s32.totalorder %s24, 1
      %p189 = por %p187, %p188
      %p190 = scmp.ne.s32.totalorder %s181, %s182
      %p191 = scmp.eq.s32.totalorder %s24, 0
      %p192 = por %p190, %p191
      %p193 = scmp.ne.s32.totalorder %s181, %s182
      %p194 = scmp.eq.s32.totalorder %s25, 1
      %p195 = por %p193, %p194
      %p197 = scmp.ne.s32.totalorder %s182, %s196
      %p198 = scmp.eq.s32.totalorder %s25, 0
      %p199 = por %p197, %p198
      %s200 = ssub.s32 %s19, %s26
      %p201 = scmp.eq.s32.totalorder %s200, 0
      %s203 = sadd.s32 %s202, 1
      %s204 = scalar_select %p201, %s202, %s203
      %p207 = pneg %p201
      %p208 = scmp.eq.s32.totalorder %s19, 1
      %p209 = por %p207, %p208
      %p210 = scmp.ne.s32.totalorder %s202, %s205
      %p211 = scmp.eq.s32.totalorder %s19, 0
      %p212 = por %p210, %p211
      %p213 = scmp.ne.s32.totalorder %s202, %s205
      %p214 = scmp.eq.s32.totalorder %s24, 1
      %p215 = por %p213, %p214
      %p216 = scmp.ne.s32.totalorder %s205, %s206
      %p217 = scmp.eq.s32.totalorder %s24, 0
      %p218 = por %p216, %p217
      %p219 = scmp.ne.s32.totalorder %s205, %s206
      %p220 = scmp.eq.s32.totalorder %s25, 1
      %p221 = por %p219, %p220
      %p223 = scmp.ne.s32.totalorder %s206, %s222
      %p224 = scmp.eq.s32.totalorder %s25, 0
      %p225 = por %p223, %p224
      %p226 = scmp.le.s32.totalorder 1, %s19
      %p227 = scmp.lt.s32.totalorder %s19, 3
      %p228 = pnand %p226, %p227
      %p229 = pneg %p228
      // Predicated region
      $region9: #{tpu_custom_call.1} parent=5 // pred_check
        _
      $region10: #{tpu_custom_call.1} parent=5 // pred_check_branch
        %231 = sbr.rel (%p228) target = $region12
      $region11: #{tpu_custom_call.1} parent=5 // pred_region
        %s232 = ssub.s32 %s19, 1
        // Predicated region
        $region13: #{tpu_custom_call.1} parent=11 // pred_check
          %p233 = pneg %p66
        $region14: #{tpu_custom_call.1} parent=11 // pred_check_branch
          %235 = sbr.rel (%p233) target = $region16
        $region15: #{tpu_custom_call.1} parent=11 // pred_region
          _
        $region16: #{tpu_custom_call.1} parent=11 // pred_fallthru
          _
        // Predicated region
        $region17: #{tpu_custom_call.1} parent=11 // pred_check
          %p236 = pneg %p87
        $region18: #{tpu_custom_call.1} parent=11 // pred_check_branch
          %238 = sbr.rel (%p236) target = $region20
        $region19: #{tpu_custom_call.1} parent=11 // pred_region
          _
        $region20: #{tpu_custom_call.1} parent=11 // pred_fallthru
          _
        // Predicated region
        $region21: #{tpu_custom_call.1} parent=11 // pred_check
          %p239 = pneg %p108
        $region22: #{tpu_custom_call.1} parent=11 // pred_check_branch
          %241 = sbr.rel (%p239) target = $region24
        $region23: #{tpu_custom_call.1} parent=11 // pred_region
          %s243 = ssub.s32 256, 256
          %244 = vsyncadd [#allocation5], %s243
          %s245 = sshll.u32 [#allocation4], 4
          %s246 = int_to_ptr.vmem [resolvable:$true] %s245
          %251 = dma.hbm_to_vmem [thread:$0]  %s3, 256, %s246, [#allocation5], 64, 64, 4
        $region24: #{tpu_custom_call.1} parent=11 // pred_fallthru
          _
        // Predicated region
        $region25: #{tpu_custom_call.1} parent=11 // pred_check
          %p252 = pneg %p129
        $region26: #{tpu_custom_call.1} parent=11 // pred_check_branch
          %254 = sbr.rel (%p252) target = $region28
        $region27: #{tpu_custom_call.1} parent=11 // pred_region
          %s256 = ssub.s32 16, 16
          %257 = vsyncadd [#allocation8], %s256
          %s259 = sshll.u32 [#allocation7], 4
          %s260 = int_to_ptr.vmem [resolvable:$true] %s259
          %262 = dma.hbm_to_vmem [thread:$0]  %s4, 16, %s260, [#allocation8]
        $region28: #{tpu_custom_call.1} parent=11 // pred_fallthru
          _
        // Predicated region
        $region29: #{tpu_custom_call.1} parent=11 // pred_check
          %p263 = pneg %p150
        $region30: #{tpu_custom_call.1} parent=11 // pred_check_branch
          %265 = sbr.rel (%p263) target = $region32
        $region31: #{tpu_custom_call.1} parent=11 // pred_region
          _
        $region32: #{tpu_custom_call.1} parent=11 // pred_fallthru
          _
        // Predicated region
        $region33: #{tpu_custom_call.1} parent=11 // pred_check
          %p266 = pneg %p171
        $region34: #{tpu_custom_call.1} parent=11 // pred_check_branch
          %268 = sbr.rel (%p266) target = $region36
        $region35: #{tpu_custom_call.1} parent=11 // pred_region
          _
        $region36: #{tpu_custom_call.1} parent=11 // pred_fallthru
          _
        // Predicated region
        $region37: #{tpu_custom_call.1} parent=11 // pred_check
          %p269 = pneg %p192
        $region38: #{tpu_custom_call.1} parent=11 // pred_check_branch
          %271 = sbr.rel (%p269) target = $region40
        $region39: #{tpu_custom_call.1} parent=11 // pred_region
          _
        $region40: #{tpu_custom_call.1} parent=11 // pred_fallthru
          _
      $region12: #{tpu_custom_call.1} parent=5 // pred_fallthru
        _
      %p272 = scmp.lt.s32.totalorder %s19, 2
      // Predicated region
      $region41: #{tpu_custom_call.1} parent=5 // pred_check
        %p273 = pneg %p272
      $region42: #{tpu_custom_call.1} parent=5 // pred_check_branch
        %275 = sbr.rel (%p273) target = $region44
      $region43: #{tpu_custom_call.1} parent=5 // pred_region
        // Predicated region
        $region45: #{tpu_custom_call.1} parent=43 // pred_check
          %p276 = pneg %p39
        $region46: #{tpu_custom_call.1} parent=43 // pred_check_branch
          %278 = sbr.rel (%p276) target = $region48
        $region47: #{tpu_custom_call.1} parent=43 // pred_region
          %p279 = scmp.lt.s32.totalorder %s19, 1
          %s280 = scalar_select %p279, %s19, 1
          %s281 = smul.addr %s280, 2
          %s282 = smul.addr %s281, 8
          %s283 = scalar_lea.vmem %s0, %s282
        $region48: #{tpu_custom_call.1} parent=43 // pred_fallthru
          _
      $region44: #{tpu_custom_call.1} parent=5 // pred_fallthru
        _
      %p284 = scmp.le.s32.totalorder 1, %s19
      %p285 = scmp.lt.s32.totalorder %s19, 3
      %p286 = pnand %p284, %p285
      %p287 = pneg %p286
      // Predicated region
      $region49: #{tpu_custom_call.1} parent=5 // pred_check
        _
      $region50: #{tpu_custom_call.1} parent=5 // pred_check_branch
        %289 = sbr.rel (%p286) target = $region52
      $region51: #{tpu_custom_call.1} parent=5 // pred_region
        %s290 = ssub.s32 %s19, 1
        // Predicated region
        $region53: #{tpu_custom_call.1} parent=51 // pred_check
          %p291 = pneg %p108
        $region54: #{tpu_custom_call.1} parent=51 // pred_check_branch
          %293 = sbr.rel (%p291) target = $region56
        $region55: #{tpu_custom_call.1} parent=51 // pred_region
          %294 = dma.done [#allocation5], 256
        $region56: #{tpu_custom_call.1} parent=51 // pred_fallthru
          _
        // Predicated region
        $region57: #{tpu_custom_call.1} parent=51 // pred_check
          %p295 = pneg %p129
        $region58: #{tpu_custom_call.1} parent=51 // pred_check_branch
          %297 = sbr.rel (%p295) target = $region60
        $region59: #{tpu_custom_call.1} parent=51 // pred_region
          %298 = dma.done [#allocation8], 16
        $region60: #{tpu_custom_call.1} parent=51 // pred_fallthru
          _
        %p299 = scmp.lt.s32.totalorder %s24, 1
        %s300 = scalar_select %p299, %s24, 1
        %s301 = smul.addr %s300, 2
        %s302 = smul.addr %s301, 8
        %s303 = scalar_lea.vmem %s0, %s302
        %p304 = pneg %p45
        %p305 = pneg %p42
        %p306 = pneg %p66
        %p307 = pneg %p63
        %p308 = pneg %p87
        %p309 = pneg %p84
        %p310 = pneg %p108
        %p311 = pneg %p105
        %p312 = pneg %p129
        %p313 = pneg %p126
        %p314 = pneg %p150
        %p315 = pneg %p147
        %p316 = pneg %p171
        %p317 = pneg %p168
        %p318 = pneg %p192
        %p319 = pneg %p189
        %p320 = pneg %p218
        %p321 = pneg %p215
        %s322 = sand.u32 %s205, 1
        %s323 = scalar_lea.sflag [#allocation6], %s322
        %s324 = sand.u32 %s205, 1
        %s325 = smul.addr %s324, 16
        %s326 = scalar_lea.vmem [#allocation9], %s325
        %p327 = scmp.lt.s32.totalorder %s24, 1
        %s328 = scalar_select %p327, %s24, 1
        %s329 = smul.addr %s328, 2
        %s330 = smul.addr %s329, 8
        %s331 = scalar_lea.vmem %s0, %s330
        %v333 = vld [vmem:[%s331] sm:$0xff]
        %v334 = vld [vmem:[%s331 + $0x8] sm:$0xff]
        %vm335 = vcmask 261120
        %v336 = vsel %vm335, %v333, 0.0
        %337 = vadd.xlane.f32.xlu0 %v336
        %v338 = vpop.xlane.xlu0 %337
        %v339 = vsel %vm335, %v334, 0.0
        %340 = vadd.xlane.f32.xlu0 %v339
        %v341 = vpop.xlane.xlu0 %340
        %v342 = vrcp.pop 32.0
        %v343 = vmul.f32 %v338, %v342
        %v344 = vmul.f32 %v341, %v342
        %v345 = vsub.f32 %v333, %v343
        %v346 = vsub.f32 %v334, %v344
        %v347 = vmul.f32 %v345, %v345
        %v348 = vmul.f32 %v346, %v346
        %v349 = vsel %vm335, %v347, 0.0
        %350 = vadd.xlane.f32.xlu0 %v349
        %v351 = vpop.xlane.xlu0 %350
        %v352 = vsel %vm335, %v348, 0.0
        %353 = vadd.xlane.f32.xlu0 %v352
        %v354 = vpop.xlane.xlu0 %353
        %v355 = vmul.f32 %v351, %v342
        %v356 = vmul.f32 %v354, %v342
        %v357 = vadd.f32 %v355, 1e-05
        %v358 = vadd.f32 %v356, 1e-05
        %v359 = vrsqrt.pop %v357
        %v360 = vrsqrt.pop %v358
        %v361 = vmul.f32 %v345, %v359
        %v362 = vmul.f32 %v346, %v360
        %v363 = vld [vmem:[%s1] sm:$0x1]
        %v365 = vlaneseq
        %v366 = vshrl.u32 %v365, 7
        %v367 = vsub.s32 0, %v366
        %v368 = vrot.slane %v363, %v367
        %v370 = vmul.f32 %v361, %v368
        %v371 = vmul.f32 %v362, %v368
        %v372 = vld [vmem:[%s2] sm:$0x1]
        %v374 = vlaneseq
        %v375 = vshrl.u32 %v374, 7
        %v376 = vsub.s32 0, %v375
        %v377 = vrot.slane %v372, %v376
        %v379 = vadd.f32 %v370, %v377
        %v380 = vadd.f32 %v371, %v377
        %v381 = vpack.c.bf16 %v380, %v379
        %v382 = vld [vmem:[#allocation4] sm:$0xf]
        %v383 = vld [vmem:[#allocation4 + $0x4] sm:$0xf]
        %v384 = vld [vmem:[#allocation4 + $0x8] sm:$0xf]
        %v385 = vld [vmem:[#allocation4 + $0xc] sm:$0xf]
        %v386 = vld [vmem:[#allocation7] sm:$0x1]
        %v388 = vlaneseq
        %v389 = vshrl.u32 %v388, 7
        %v390 = vsub.s32 0, %v389
        %v391 = vrot.slane %v386, %v390
        %v397 = vunpack.c.l.b16 %v382
        %v398 = vunpack.c.l.b16 %v383
        %v399 = vunpack.c.l.b16 %v384
        %v400 = vunpack.c.l.b16 %v385
        %v401 = vpack.c.b16 %v398, %v397
        %v402 = vpack.c.b16 %v400, %v399
        %v406 = vsel %vm335, %v381, 0
        %408 = vmatprep.subr.bf16.mxu0 0
        %409 = vmatpush1.bf16.msra.mxu0 %v401
        %410 = vmatprep.subr.bf16.mxu0 0
        %411 = vmatpush1.bf16.msra.mxu0 %v402
        %412 = vmatprep.subr.bf16.mxu0 0
        %413 = vmatpush1.bf16.msra.mxu0 0
        %414 = vmatprep.subr.bf16.mxu0 0
        %415 = vmatpush1.bf16.msra.mxu0 0
        %416 = vmatprep.subr.bf16.mxu0 0
        %417 = vmatpush1.bf16.msra.mxu0 0
        %418 = vmatprep.subr.bf16.mxu0 0
        %419 = vmatpush1.bf16.msra.mxu0 0
        %420 = vmatprep.subr.bf16.mxu0 0
        %421 = vmatpush1.bf16.msra.mxu0 0
        %422 = vmatprep.subr.bf16.mxu0 0
        %423 = vmatpush1.bf16.msra.mxu0 0
        %424 = vmatprep.subr.bf16.mxu0 0
        %425 = vmatpush1.bf16.msra.mxu0 0
        %426 = vmatprep.subr.bf16.mxu0 0
        %427 = vmatpush1.bf16.msra.mxu0 0
        %428 = vmatprep.subr.bf16.mxu0 0
        %429 = vmatpush1.bf16.msra.mxu0 0
        %430 = vmatprep.subr.bf16.mxu0 0
        %431 = vmatpush1.bf16.msra.mxu0 0
        %432 = vmatprep.subr.bf16.mxu0 0
        %433 = vmatpush1.bf16.msra.mxu0 0
        %434 = vmatprep.subr.bf16.mxu0 0
        %435 = vmatpush1.bf16.msra.mxu0 0
        %436 = vmatprep.subr.bf16.mxu0 0
        %437 = vmatpush1.bf16.msra.mxu0 0
        %438 = vmatprep.subr.bf16.mxu0 0
        %439 = vmatpush1.bf16.msra.mxu0 0
        %440 = vmatprep.mubr.bf16.mxu0 0
        %441 = vmatmul.mubr.bf16.gmra.mrb[0].mxu0 %v406
        %v442 = vpop.f32.mrb[0].mxu0
        %v443 = vadd.f32 %v391, %v442
        %v444 = vpop.f32.mrb[0].mxu0
        %v445 = vpop.f32.mrb[0].mxu0
        %v446 = vadd.f32 %v391, %v445
        %v447 = vpop.f32.mrb[0].mxu0
        %448 = vdwg.mxu0
        %v449 = vpack.c.bf16 %v446, %v443
        %450 = vst [vmem:[#allocation2] sm:$0xff] %v449
        %v451 = vld [vmem:[#allocation2] sm:$0xff]
        %453 = vrot.lane.b32.xlu0 %v451, 120
        %v454 = vpop.permute.xlu0 %453
        %455 = vrot.lane.b32.xlu0 %v451, 112
        %v456 = vpop.permute.xlu0 %455
        %457 = vrot.lane.b32.xlu0 %v451, 104
        %v458 = vpop.permute.xlu0 %457
        %459 = vrot.lane.b32.xlu0 %v451, 96
        %v460 = vpop.permute.xlu0 %459
        %461 = vrot.lane.b32.xlu0 %v451, 80
        %v462 = vpop.permute.xlu0 %461
        %vm463 = vcmask 64512
        %v465 = vsel %vm463, %v451, 0
        %v468 = vsel %vm463, %v460, 0
        %470 = vmatprep.subr.bf16.mxu0 0
        %471 = vmatpush1.bf16.xpose.msra.mxu0 %v468
        %472 = vmatprep.subr.bf16.mxu0 0
        %473 = vmatpush1.bf16.xpose.msra.mxu0 0
        %474 = vmatprep.subr.bf16.mxu0 0
        %475 = vmatpush1.bf16.xpose.msra.mxu0 0
        %476 = vmatprep.subr.bf16.mxu0 0
        %477 = vmatpush1.bf16.xpose.msra.mxu0 0
        %478 = vmatprep.subr.bf16.mxu0 0
        %479 = vmatpush1.bf16.xpose.msra.mxu0 0
        %480 = vmatprep.subr.bf16.mxu0 0
        %481 = vmatpush1.bf16.xpose.msra.mxu0 0
        %482 = vmatprep.subr.bf16.mxu0 0
        %483 = vmatpush1.bf16.xpose.msra.mxu0 0
        %484 = vmatprep.subr.bf16.mxu0 0
        %485 = vmatpush1.bf16.xpose.msra.mxu0 0
        %486 = vmatprep.subr.bf16.mxu0 0
        %487 = vmatpush1.bf16.xpose.msra.mxu0 0
        %488 = vmatprep.subr.bf16.mxu0 0
        %489 = vmatpush1.bf16.xpose.msra.mxu0 0
        %490 = vmatprep.subr.bf16.mxu0 0
        %491 = vmatpush1.bf16.xpose.msra.mxu0 0
        %492 = vmatprep.subr.bf16.mxu0 0
        %493 = vmatpush1.bf16.xpose.msra.mxu0 0
        %494 = vmatprep.subr.bf16.mxu0 0
        %495 = vmatpush1.bf16.xpose.msra.mxu0 0
        %496 = vmatprep.subr.bf16.mxu0 0
        %497 = vmatpush1.bf16.xpose.msra.mxu0 0
        %498 = vmatprep.subr.bf16.mxu0 0
        %499 = vmatpush1.bf16.xpose.msra.mxu0 0
        %500 = vmatprep.subr.bf16.mxu0 0
        %501 = vmatpush1.bf16.xpose.msra.mxu0 0
        %502 = vmatprep.mubr.bf16.mxu0 0
        %503 = vmatmul.mubr.bf16.gmra.mrb[0].mxu0 %v465
        %v504 = vpop.f32.mrb[0].mxu0
        %v505 = vadd.f32 0.0, %v504
        %v506 = vpop.f32.mrb[0].mxu0
        %v507 = vpop.f32.mrb[0].mxu0
        %v508 = vadd.f32 0.0, %v507
        %v509 = vpop.f32.mrb[0].mxu0
        %510 = vdwg.mxu0
        %511 = vrot.lane.b32.xlu0 %v454, 96
        %v512 = vpop.permute.xlu0 %511
        %v514 = vsel %vm463, %v454, 0
        %v517 = vsel %vm463, %v512, 0
        %519 = vmatprep.subr.bf16.mxu0 0
        %520 = vmatpush1.bf16.xpose.msra.mxu0 %v517
        %521 = vmatprep.subr.bf16.mxu0 0
        %522 = vmatpush1.bf16.xpose.msra.mxu0 0
        %523 = vmatprep.subr.bf16.mxu0 0
        %524 = vmatpush1.bf16.xpose.msra.mxu0 0
        %525 = vmatprep.subr.bf16.mxu0 0
        %526 = vmatpush1.bf16.xpose.msra.mxu0 0
        %527 = vmatprep.subr.bf16.mxu0 0
        %528 = vmatpush1.bf16.xpose.msra.mxu0 0
        %529 = vmatprep.subr.bf16.mxu0 0
        %530 = vmatpush1.bf16.xpose.msra.mxu0 0
        %531 = vmatprep.subr.bf16.mxu0 0
        %532 = vmatpush1.bf16.xpose.msra.mxu0 0
        %533 = vmatprep.subr.bf16.mxu0 0
        %534 = vmatpush1.bf16.xpose.msra.mxu0 0
        %535 = vmatprep.subr.bf16.mxu0 0
        %536 = vmatpush1.bf16.xpose.msra.mxu0 0
        %537 = vmatprep.subr.bf16.mxu0 0
        %538 = vmatpush1.bf16.xpose.msra.mxu0 0
        %539 = vmatprep.subr.bf16.mxu0 0
        %540 = vmatpush1.bf16.xpose.msra.mxu0 0
        %541 = vmatprep.subr.bf16.mxu0 0
        %542 = vmatpush1.bf16.xpose.msra.mxu0 0
        %543 = vmatprep.subr.bf16.mxu0 0
        %544 = vmatpush1.bf16.xpose.msra.mxu0 0
        %545 = vmatprep.subr.bf16.mxu0 0
        %546 = vmatpush1.bf16.xpose.msra.mxu0 0
        %547 = vmatprep.subr.bf16.mxu0 0
        %548 = vmatpush1.bf16.xpose.msra.mxu0 0
        %549 = vmatprep.subr.bf16.mxu0 0
        %550 = vmatpush1.bf16.xpose.msra.mxu0 0
        %551 = vmatprep.mubr.bf16.mxu0 0
        %552 = vmatmul.mubr.bf16.gmra.mrb[0].mxu0 %v514
        %v553 = vpop.f32.mrb[0].mxu0
        %v554 = vadd.f32 0.0, %v553
        %v555 = vpop.f32.mrb[0].mxu0
        %v556 = vpop.f32.mrb[0].mxu0
        %v557 = vadd.f32 0.0, %v556
        %v558 = vpop.f32.mrb[0].mxu0
        %559 = vdwg.mxu0
        %560 = vrot.lane.b32.xlu0 %v456, 96
        %v561 = vpop.permute.xlu0 %560
        %v563 = vsel %vm463, %v456, 0
        %v566 = vsel %vm463, %v561, 0
        %568 = vmatprep.subr.bf16.mxu0 0
        %569 = vmatpush1.bf16.xpose.msra.mxu0 %v566
        %570 = vmatprep.subr.bf16.mxu0 0
        %571 = vmatpush1.bf16.xpose.msra.mxu0 0
        %572 = vmatprep.subr.bf16.mxu0 0
        %573 = vmatpush1.bf16.xpose.msra.mxu0 0
        %574 = vmatprep.subr.bf16.mxu0 0
        %575 = vmatpush1.bf16.xpose.msra.mxu0 0
        %576 = vmatprep.subr.bf16.mxu0 0
        %577 = vmatpush1.bf16.xpose.msra.mxu0 0
        %578 = vmatprep.subr.bf16.mxu0 0
        %579 = vmatpush1.bf16.xpose.msra.mxu0 0
        %580 = vmatprep.subr.bf16.mxu0 0
        %581 = vmatpush1.bf16.xpose.msra.mxu0 0
        %582 = vmatprep.subr.bf16.mxu0 0
        %583 = vmatpush1.bf16.xpose.msra.mxu0 0
        %584 = vmatprep.subr.bf16.mxu0 0
        %585 = vmatpush1.bf16.xpose.msra.mxu0 0
        %586 = vmatprep.subr.bf16.mxu0 0
        %587 = vmatpush1.bf16.xpose.msra.mxu0 0
        %588 = vmatprep.subr.bf16.mxu0 0
        %589 = vmatpush1.bf16.xpose.msra.mxu0 0
        %590 = vmatprep.subr.bf16.mxu0 0
        %591 = vmatpush1.bf16.xpose.msra.mxu0 0
        %592 = vmatprep.subr.bf16.mxu0 0
        %593 = vmatpush1.bf16.xpose.msra.mxu0 0
        %594 = vmatprep.subr.bf16.mxu0 0
        %595 = vmatpush1.bf16.xpose.msra.mxu0 0
        %596 = vmatprep.subr.bf16.mxu0 0
        %597 = vmatpush1.bf16.xpose.msra.mxu0 0
        %598 = vmatprep.subr.bf16.mxu0 0
        %599 = vmatpush1.bf16.xpose.msra.mxu0 0
        %600 = vmatprep.mubr.bf16.mxu0 0
        %601 = vmatmul.mubr.bf16.gmra.mrb[0].mxu0 %v563
        %v602 = vpop.f32.mrb[0].mxu0
        %v603 = vadd.f32 0.0, %v602
        %v604 = vpop.f32.mrb[0].mxu0
        %v605 = vpop.f32.mrb[0].mxu0
        %v606 = vadd.f32 0.0, %v605
        %v607 = vpop.f32.mrb[0].mxu0
        %608 = vdwg.mxu0
        %609 = vrot.lane.b32.xlu0 %v458, 96
        %v610 = vpop.permute.xlu0 %609
        %v612 = vsel %vm463, %v458, 0
        %v615 = vsel %vm463, %v610, 0
        %617 = vmatprep.subr.bf16.mxu0 0
        %618 = vmatpush1.bf16.xpose.msra.mxu0 %v615
        %619 = vmatprep.subr.bf16.mxu0 0
        %620 = vmatpush1.bf16.xpose.msra.mxu0 0
        %621 = vmatprep.subr.bf16.mxu0 0
        %622 = vmatpush1.bf16.xpose.msra.mxu0 0
        %623 = vmatprep.subr.bf16.mxu0 0
        %624 = vmatpush1.bf16.xpose.msra.mxu0 0
        %625 = vmatprep.subr.bf16.mxu0 0
        %626 = vmatpush1.bf16.xpose.msra.mxu0 0
        %627 = vmatprep.subr.bf16.mxu0 0
        %628 = vmatpush1.bf16.xpose.msra.mxu0 0
        %629 = vmatprep.subr.bf16.mxu0 0
        %630 = vmatpush1.bf16.xpose.msra.mxu0 0
        %631 = vmatprep.subr.bf16.mxu0 0
        %632 = vmatpush1.bf16.xpose.msra.mxu0 0
        %633 = vmatprep.subr.bf16.mxu0 0
        %634 = vmatpush1.bf16.xpose.msra.mxu0 0
        %635 = vmatprep.subr.bf16.mxu0 0
        %636 = vmatpush1.bf16.xpose.msra.mxu0 0
        %637 = vmatprep.subr.bf16.mxu0 0
        %638 = vmatpush1.bf16.xpose.msra.mxu0 0
        %639 = vmatprep.subr.bf16.mxu0 0
        %640 = vmatpush1.bf16.xpose.msra.mxu0 0
        %641 = vmatprep.subr.bf16.mxu0 0
        %642 = vmatpush1.bf16.xpose.msra.mxu0 0
        %643 = vmatprep.subr.bf16.mxu0 0
        %644 = vmatpush1.bf16.xpose.msra.mxu0 0
        %645 = vmatprep.subr.bf16.mxu0 0
        %646 = vmatpush1.bf16.xpose.msra.mxu0 0
        %647 = vmatprep.subr.bf16.mxu0 0
        %648 = vmatpush1.bf16.xpose.msra.mxu0 0
        %649 = vmatprep.mubr.bf16.mxu0 0
        %650 = vmatmul.mubr.bf16.gmra.mrb[0].mxu0 %v612
        %v651 = vpop.f32.mrb[0].mxu0
        %v652 = vadd.f32 0.0, %v651
        %v653 = vpop.f32.mrb[0].mxu0
        %v654 = vpop.f32.mrb[0].mxu0
        %v655 = vadd.f32 0.0, %v654
        %v656 = vpop.f32.mrb[0].mxu0
        %657 = vdwg.mxu0
        %v658 = vld [vmem:[%s7] sm:$0xf]
        %v659 = vld [vmem:[%s7 + $0x4] sm:$0xf]
        %v660 = vld [vmem:[%s7 + $0x8] sm:$0xf]
        %v661 = vld [vmem:[%s7 + $0xc] sm:$0xf]
        %v662 = vld [vmem:[%s7 + $0x10] sm:$0xf]
        %v663 = vld [vmem:[%s7 + $0x14] sm:$0xf]
        %v664 = vld [vmem:[%s7 + $0x18] sm:$0xf]
        %v665 = vld [vmem:[%s7 + $0x1c] sm:$0xf]
        %v666 = vunpack.c.l.bf16 %v658
        %v667 = vunpack.c.l.bf16 %v659
        %v668 = vunpack.c.l.bf16 %v660
        %v669 = vunpack.c.l.bf16 %v661
        %v670 = vunpack.c.l.bf16 %v662
        %v671 = vunpack.c.l.bf16 %v663
        %v672 = vunpack.c.l.bf16 %v664
        %v673 = vunpack.c.l.bf16 %v665
        %v674 = vadd.f32 %v505, %v666
        %v675 = vadd.f32 %v508, %v667
        %v676 = vadd.f32 %v554, %v668
        %v677 = vadd.f32 %v557, %v669
        %v678 = vadd.f32 %v603, %v670
        %v679 = vadd.f32 %v606, %v671
        %v680 = vadd.f32 %v652, %v672
        %v681 = vadd.f32 %v655, %v673
        %vm682 = vcmask 130048
        %v683 = vsel %vm682, %v674, -inf
        %684 = vmax.xlane.f32.xlu0 %v683
        %v685 = vpop.xlane.xlu0 %684
        %v686 = vsel %vm682, %v675, -inf
        %687 = vmax.xlane.f32.xlu0 %v686
        %v688 = vpop.xlane.xlu0 %687
        %v689 = vsel %vm682, %v676, -inf
        %690 = vmax.xlane.f32.xlu0 %v689
        %v691 = vpop.xlane.xlu0 %690
        %v692 = vsel %vm682, %v677, -inf
        %693 = vmax.xlane.f32.xlu0 %v692
        %v694 = vpop.xlane.xlu0 %693
        %v695 = vsel %vm682, %v678, -inf
        %696 = vmax.xlane.f32.xlu0 %v695
        %v697 = vpop.xlane.xlu0 %696
        %v698 = vsel %vm682, %v679, -inf
        %699 = vmax.xlane.f32.xlu0 %v698
        %v700 = vpop.xlane.xlu0 %699
        %v701 = vsel %vm682, %v680, -inf
        %702 = vmax.xlane.f32.xlu0 %v701
        %v703 = vpop.xlane.xlu0 %702
        %v704 = vsel %vm682, %v681, -inf
        %705 = vmax.xlane.f32.xlu0 %v704
        %v706 = vpop.xlane.xlu0 %705
        %v707 = vsub.f32 %v674, %v685
        %v708 = vsub.f32 %v675, %v688
        %v709 = vsub.f32 %v676, %v691
        %v710 = vsub.f32 %v677, %v694
        %v711 = vsub.f32 %v678, %v697
        %v712 = vsub.f32 %v679, %v700
        %v713 = vsub.f32 %v680, %v703
        %v714 = vsub.f32 %v681, %v706
        %v715 = vmul.f32 %v707, 1.442695
        %v716 = vpow.pop %v715
        %v717 = vmul.f32 %v708, 1.442695
        %v718 = vpow.pop %v717
        %v719 = vmul.f32 %v709, 1.442695
        %v720 = vpow.pop %v719
        %v721 = vmul.f32 %v710, 1.442695
        %v722 = vpow.pop %v721
        %v723 = vmul.f32 %v711, 1.442695
        %v724 = vpow.pop %v723
        %v725 = vmul.f32 %v712, 1.442695
        %v726 = vpow.pop %v725
        %v727 = vmul.f32 %v713, 1.442695
        %v728 = vpow.pop %v727
        %v729 = vmul.f32 %v714, 1.442695
        %v730 = vpow.pop %v729
        %v731 = vsel %vm682, %v716, 0.0
        %732 = vadd.xlane.f32.xlu0 %v731
        %v733 = vpop.xlane.xlu0 %732
        %v734 = vsel %vm682, %v718, 0.0
        %735 = vadd.xlane.f32.xlu0 %v734
        %v736 = vpop.xlane.xlu0 %735
        %v737 = vsel %vm682, %v720, 0.0
        %738 = vadd.xlane.f32.xlu0 %v737
        %v739 = vpop.xlane.xlu0 %738
        %v740 = vsel %vm682, %v722, 0.0
        %741 = vadd.xlane.f32.xlu0 %v740
        %v742 = vpop.xlane.xlu0 %741
        %v743 = vsel %vm682, %v724, 0.0
        %744 = vadd.xlane.f32.xlu0 %v743
        %v745 = vpop.xlane.xlu0 %744
        %v746 = vsel %vm682, %v726, 0.0
        %747 = vadd.xlane.f32.xlu0 %v746
        %v748 = vpop.xlane.xlu0 %747
        %v749 = vsel %vm682, %v728, 0.0
        %750 = vadd.xlane.f32.xlu0 %v749
        %v751 = vpop.xlane.xlu0 %750
        %v752 = vsel %vm682, %v730, 0.0
        %753 = vadd.xlane.f32.xlu0 %v752
        %v754 = vpop.xlane.xlu0 %753
        %v755 = vrcp.pop %v733
        %v756 = vrcp.pop %v736
        %v757 = vrcp.pop %v739
        %v758 = vrcp.pop %v742
        %v759 = vrcp.pop %v745
        %v760 = vrcp.pop %v748
        %v761 = vrcp.pop %v751
        %v762 = vrcp.pop %v754
        %v763 = vpack.c.bf16 %v718, %v716
        %v764 = vpack.c.bf16 %v722, %v720
        %v765 = vpack.c.bf16 %v726, %v724
        %v766 = vpack.c.bf16 %v730, %v728
        %767 = vrot.lane.b32.xlu0 %v451, 64
        %v768 = vpop.permute.xlu0 %767
        %v771 = vsel %vm682, %v763, 0
        %773 = vmatprep.subr.bf16.mxu0 0
        %774 = vmatpush1.bf16.msra.mxu0 %v768
        %775 = vmatprep.subr.bf16.mxu0 0
        %776 = vmatpush1.bf16.msra.mxu0 0
        %777 = vmatprep.subr.bf16.mxu0 0
        %778 = vmatpush1.bf16.msra.mxu0 0
        %779 = vmatprep.subr.bf16.mxu0 0
        %780 = vmatpush1.bf16.msra.mxu0 0
        %781 = vmatprep.subr.bf16.mxu0 0
        %782 = vmatpush1.bf16.msra.mxu0 0
        %783 = vmatprep.subr.bf16.mxu0 0
        %784 = vmatpush1.bf16.msra.mxu0 0
        %785 = vmatprep.subr.bf16.mxu0 0
        %786 = vmatpush1.bf16.msra.mxu0 0
        %787 = vmatprep.subr.bf16.mxu0 0
        %788 = vmatpush1.bf16.msra.mxu0 0
        %789 = vmatprep.subr.bf16.mxu0 0
        %790 = vmatpush1.bf16.msra.mxu0 0
        %791 = vmatprep.subr.bf16.mxu0 0
        %792 = vmatpush1.bf16.msra.mxu0 0
        %793 = vmatprep.subr.bf16.mxu0 0
        %794 = vmatpush1.bf16.msra.mxu0 0
        %795 = vmatprep.subr.bf16.mxu0 0
        %796 = vmatpush1.bf16.msra.mxu0 0
        %797 = vmatprep.subr.bf16.mxu0 0
        %798 = vmatpush1.bf16.msra.mxu0 0
        %799 = vmatprep.subr.bf16.mxu0 0
        %800 = vmatpush1.bf16.msra.mxu0 0
        %801 = vmatprep.subr.bf16.mxu0 0
        %802 = vmatpush1.bf16.msra.mxu0 0
        %803 = vmatprep.subr.bf16.mxu0 0
        %804 = vmatpush1.bf16.msra.mxu0 0
        %805 = vmatprep.mubr.bf16.mxu0 0
        %806 = vmatmul.mubr.bf16.gmra.mrb[0].mxu0 %v771
        %v807 = vpop.f32.mrb[0].mxu0
        %v808 = vadd.f32 0.0, %v807
        %v809 = vpop.f32.mrb[0].mxu0
        %v810 = vpop.f32.mrb[0].mxu0
        %v811 = vadd.f32 0.0, %v810
        %v812 = vpop.f32.mrb[0].mxu0
        %813 = vdwg.mxu0
        %814 = vrot.lane.b32.xlu0 %v456, 64
        %v815 = vpop.permute.xlu0 %814
        %v818 = vsel %vm682, %v764, 0
        %820 = vmatprep.subr.bf16.mxu0 0
        %821 = vmatpush1.bf16.msra.mxu0 %v815
        %822 = vmatprep.subr.bf16.mxu0 0
        %823 = vmatpush1.bf16.msra.mxu0 0
        %824 = vmatprep.subr.bf16.mxu0 0
        %825 = vmatpush1.bf16.msra.mxu0 0
        %826 = vmatprep.subr.bf16.mxu0 0
        %827 = vmatpush1.bf16.msra.mxu0 0
        %828 = vmatprep.subr.bf16.mxu0 0
        %829 = vmatpush1.bf16.msra.mxu0 0
        %830 = vmatprep.subr.bf16.mxu0 0
        %831 = vmatpush1.bf16.msra.mxu0 0
        %832 = vmatprep.subr.bf16.mxu0 0
        %833 = vmatpush1.bf16.msra.mxu0 0
        %834 = vmatprep.subr.bf16.mxu0 0
        %835 = vmatpush1.bf16.msra.mxu0 0
        %836 = vmatprep.subr.bf16.mxu0 0
        %837 = vmatpush1.bf16.msra.mxu0 0
        %838 = vmatprep.subr.bf16.mxu0 0
        %839 = vmatpush1.bf16.msra.mxu0 0
        %840 = vmatprep.subr.bf16.mxu0 0
        %841 = vmatpush1.bf16.msra.mxu0 0
        %842 = vmatprep.subr.bf16.mxu0 0
        %843 = vmatpush1.bf16.msra.mxu0 0
        %844 = vmatprep.subr.bf16.mxu0 0
        %845 = vmatpush1.bf16.msra.mxu0 0
        %846 = vmatprep.subr.bf16.mxu0 0
        %847 = vmatpush1.bf16.msra.mxu0 0
        %848 = vmatprep.subr.bf16.mxu0 0
        %849 = vmatpush1.bf16.msra.mxu0 0
        %850 = vmatprep.subr.bf16.mxu0 0
        %851 = vmatpush1.bf16.msra.mxu0 0
        %852 = vmatprep.mubr.bf16.mxu0 0
        %853 = vmatmul.mubr.bf16.gmra.mrb[0].mxu0 %v818
        %v854 = vpop.f32.mrb[0].mxu0
        %v855 = vadd.f32 0.0, %v854
        %v856 = vpop.f32.mrb[0].mxu0
        %v857 = vpop.f32.mrb[0].mxu0
        %v858 = vadd.f32 0.0, %v857
        %v859 = vpop.f32.mrb[0].mxu0
        %860 = vdwg.mxu0
        %861 = vrot.lane.b32.xlu0 %v460, 64
        %v862 = vpop.permute.xlu0 %861
        %v865 = vsel %vm682, %v765, 0
        %867 = vmatprep.subr.bf16.mxu0 0
        %868 = vmatpush1.bf16.msra.mxu0 %v862
        %869 = vmatprep.subr.bf16.mxu0 0
        %870 = vmatpush1.bf16.msra.mxu0 0
        %871 = vmatprep.subr.bf16.mxu0 0
        %872 = vmatpush1.bf16.msra.mxu0 0
        %873 = vmatprep.subr.bf16.mxu0 0
        %874 = vmatpush1.bf16.msra.mxu0 0
        %875 = vmatprep.subr.bf16.mxu0 0
        %876 = vmatpush1.bf16.msra.mxu0 0
        %877 = vmatprep.subr.bf16.mxu0 0
        %878 = vmatpush1.bf16.msra.mxu0 0
        %879 = vmatprep.subr.bf16.mxu0 0
        %880 = vmatpush1.bf16.msra.mxu0 0
        %881 = vmatprep.subr.bf16.mxu0 0
        %882 = vmatpush1.bf16.msra.mxu0 0
        %883 = vmatprep.subr.bf16.mxu0 0
        %884 = vmatpush1.bf16.msra.mxu0 0
        %885 = vmatprep.subr.bf16.mxu0 0
        %886 = vmatpush1.bf16.msra.mxu0 0
        %887 = vmatprep.subr.bf16.mxu0 0
        %888 = vmatpush1.bf16.msra.mxu0 0
        %889 = vmatprep.subr.bf16.mxu0 0
        %890 = vmatpush1.bf16.msra.mxu0 0
        %891 = vmatprep.subr.bf16.mxu0 0
        %892 = vmatpush1.bf16.msra.mxu0 0
        %893 = vmatprep.subr.bf16.mxu0 0
        %894 = vmatpush1.bf16.msra.mxu0 0
        %895 = vmatprep.subr.bf16.mxu0 0
        %896 = vmatpush1.bf16.msra.mxu0 0
        %897 = vmatprep.subr.bf16.mxu0 0
        %898 = vmatpush1.bf16.msra.mxu0 0
        %899 = vmatprep.mubr.bf16.mxu0 0
        %900 = vmatmul.mubr.bf16.gmra.mrb[0].mxu0 %v865
        %v901 = vpop.f32.mrb[0].mxu0
        %v902 = vadd.f32 0.0, %v901
        %v903 = vpop.f32.mrb[0].mxu0
        %v904 = vpop.f32.mrb[0].mxu0
        %v905 = vadd.f32 0.0, %v904
        %v906 = vpop.f32.mrb[0].mxu0
        %907 = vdwg.mxu0
        %908 = vrot.lane.b32.xlu0 %v462, 64
        %v909 = vpop.permute.xlu0 %908
        %v912 = vsel %vm682, %v766, 0
        %914 = vmatprep.subr.bf16.mxu0 0
        %915 = vmatpush1.bf16.msra.mxu0 %v909
        %916 = vmatprep.subr.bf16.mxu0 0
        %917 = vmatpush1.bf16.msra.mxu0 0
        %918 = vmatprep.subr.bf16.mxu0 0
        %919 = vmatpush1.bf16.msra.mxu0 0
        %920 = vmatprep.subr.bf16.mxu0 0
        %921 = vmatpush1.bf16.msra.mxu0 0
        %922 = vmatprep.subr.bf16.mxu0 0
        %923 = vmatpush1.bf16.msra.mxu0 0
        %924 = vmatprep.subr.bf16.mxu0 0
        %925 = vmatpush1.bf16.msra.mxu0 0
        %926 = vmatprep.subr.bf16.mxu0 0
        %927 = vmatpush1.bf16.msra.mxu0 0
        %928 = vmatprep.subr.bf16.mxu0 0
        %929 = vmatpush1.bf16.msra.mxu0 0
        %930 = vmatprep.subr.bf16.mxu0 0
        %931 = vmatpush1.bf16.msra.mxu0 0
        %932 = vmatprep.subr.bf16.mxu0 0
        %933 = vmatpush1.bf16.msra.mxu0 0
        %934 = vmatprep.subr.bf16.mxu0 0
        %935 = vmatpush1.bf16.msra.mxu0 0
        %936 = vmatprep.subr.bf16.mxu0 0
        %937 = vmatpush1.bf16.msra.mxu0 0
        %938 = vmatprep.subr.bf16.mxu0 0
        %939 = vmatpush1.bf16.msra.mxu0 0
        %940 = vmatprep.subr.bf16.mxu0 0
        %941 = vmatpush1.bf16.msra.mxu0 0
        %942 = vmatprep.subr.bf16.mxu0 0
        %943 = vmatpush1.bf16.msra.mxu0 0
        %944 = vmatprep.subr.bf16.mxu0 0
        %945 = vmatpush1.bf16.msra.mxu0 0
        %946 = vmatprep.mubr.bf16.mxu0 0
        %947 = vmatmul.mubr.bf16.gmra.mrb[0].mxu0 %v912
        %v948 = vpop.f32.mrb[0].mxu0
        %v949 = vadd.f32 0.0, %v948
        %v950 = vpop.f32.mrb[0].mxu0
        %v951 = vpop.f32.mrb[0].mxu0
        %v952 = vadd.f32 0.0, %v951
        %v953 = vpop.f32.mrb[0].mxu0
        %954 = vdwg.mxu0
        %v955 = vmul.f32 %v808, %v755
        %v956 = vmul.f32 %v811, %v756
        %v957 = vmul.f32 %v855, %v757
        %v958 = vmul.f32 %v858, %v758
        %v959 = vmul.f32 %v902, %v759
        %v960 = vmul.f32 %v905, %v760
        %v961 = vmul.f32 %v949, %v761
        %v962 = vmul.f32 %v952, %v762
        %v963 = vpack.c.bf16 %v956, %v955
        %964 = vst.msk [vmem:[#allocation3] sm:$0xff] %vm682, %v963
        %v965 = vpack.c.bf16 %v958, %v957
        %967 = vrot.lane.b32.xlu0 %v965, 16
        %v968 = vpop.permute.xlu0 %967
        %vm970 = vcmask 261248
        %971 = vst.msk [vmem:[#allocation3] sm:$0xff] %vm970, %v968
        %v972 = vpack.c.bf16 %v960, %v959
        %974 = vrot.lane.b32.xlu0 %v972, 32
        %v975 = vpop.permute.xlu0 %974
        %vm977 = vcmask 392448
        %978 = vst.msk [vmem:[#allocation3] sm:$0xff] %vm977, %v975
        %v979 = vpack.c.bf16 %v962, %v961
        %981 = vrot.lane.b32.xlu0 %v979, 48
        %v982 = vpop.permute.xlu0 %981
        %vm984 = vcmask 523648
        %985 = vst.msk [vmem:[#allocation3] sm:$0xff] %vm984, %v982
        %v986 = vld [vmem:[#allocation3] sm:$0xff]
        %v987 = vld [vmem:[%s5] sm:$0xf]
        %v988 = vld [vmem:[%s5 + $0x4] sm:$0xf]
        %v989 = vld [vmem:[%s5 + $0x8] sm:$0xf]
        %v990 = vld [vmem:[%s5 + $0xc] sm:$0xf]
        %v991 = vld [vmem:[%s5 + $0x10] sm:$0xf]
        %v992 = vld [vmem:[%s5 + $0x14] sm:$0xf]
        %v993 = vld [vmem:[%s5 + $0x18] sm:$0xf]
        %v994 = vld [vmem:[%s5 + $0x1c] sm:$0xf]
        %v995 = vld [vmem:[%s6] sm:$0x1]
        %v997 = vlaneseq
        %v998 = vshrl.u32 %v997, 7
        %v999 = vsub.s32 0, %v998
        %v1000 = vrot.slane %v995, %v999
        %v1010 = vunpack.c.l.b16 %v987
        %v1011 = vunpack.c.l.b16 %v988
        %v1012 = vunpack.c.l.b16 %v989
        %v1013 = vunpack.c.l.b16 %v990
        %v1014 = vunpack.c.l.b16 %v991
        %v1015 = vunpack.c.l.b16 %v992
        %v1016 = vunpack.c.l.b16 %v993
        %v1017 = vunpack.c.l.b16 %v994
        %v1018 = vpack.c.b16 %v1011, %v1010
        %v1019 = vpack.c.b16 %v1013, %v1012
        %v1020 = vpack.c.b16 %v1015, %v1014
        %v1021 = vpack.c.b16 %v1017, %v1016
        %vm1026 = vcmask 523264
        %v1028 = vsel %vm1026, %v986, 0
        %1030 = vmatprep.subr.bf16.mxu0 0
        %1031 = vmatpush1.bf16.msra.mxu0 %v1018
        %1032 = vmatprep.subr.bf16.mxu0 0
        %1033 = vmatpush1.bf16.msra.mxu0 %v1019
        %1034 = vmatprep.subr.bf16.mxu0 0
        %1035 = vmatpush1.bf16.msra.mxu0 %v1020
        %1036 = vmatprep.subr.bf16.mxu0 0
        %1037 = vmatpush1.bf16.msra.mxu0 %v1021
        %1038 = vmatprep.subr.bf16.mxu0 0
        %1039 = vmatpush1.bf16.msra.mxu0 0
        %1040 = vmatprep.subr.bf16.mxu0 0
        %1041 = vmatpush1.bf16.msra.mxu0 0
        %1042 = vmatprep.subr.bf16.mxu0 0
        %1043 = vmatpush1.bf16.msra.mxu0 0
        %1044 = vmatprep.subr.bf16.mxu0 0
        %1045 = vmatpush1.bf16.msra.mxu0 0
        %1046 = vmatprep.subr.bf16.mxu0 0
        %1047 = vmatpush1.bf16.msra.mxu0 0
        %1048 = vmatprep.subr.bf16.mxu0 0
        %1049 = vmatpush1.bf16.msra.mxu0 0
        %1050 = vmatprep.subr.bf16.mxu0 0
        %1051 = vmatpush1.bf16.msra.mxu0 0
        %1052 = vmatprep.subr.bf16.mxu0 0
        %1053 = vmatpush1.bf16.msra.mxu0 0
        %1054 = vmatprep.subr.bf16.mxu0 0
        %1055 = vmatpush1.bf16.msra.mxu0 0
        %1056 = vmatprep.subr.bf16.mxu0 0
        %1057 = vmatpush1.bf16.msra.mxu0 0
        %1058 = vmatprep.subr.bf16.mxu0 0
        %1059 = vmatpush1.bf16.msra.mxu0 0
        %1060 = vmatprep.subr.bf16.mxu0 0
        %1061 = vmatpush1.bf16.msra.mxu0 0
        %1062 = vmatprep.mubr.bf16.mxu0 0
        %1063 = vmatmul.mubr.bf16.gmra.mrb[0].mxu0 %v1028
        %v1064 = vpop.f32.mrb[0].mxu0
        %v1065 = vadd.f32 %v1000, %v1064
        %v1066 = vpop.f32.mrb[0].mxu0
        %v1067 = vpop.f32.mrb[0].mxu0
        %v1068 = vadd.f32 %v1000, %v1067
        %v1069 = vpop.f32.mrb[0].mxu0
        %1070 = vdwg.mxu0
        %1071 = vst.msk [vmem:[%s326] sm:$0xff] %vm335, %v1065
        %1072 = vst.msk [vmem:[%s326 + $0x8] sm:$0xff] %vm335, %v1068
        %s1073 = sand.u32 %s205, 1
        %s1074 = scalar_lea.sflag [#allocation6], %s1073
        %s1075 = sand.u32 %s205, 1
        %s1076 = smul.addr %s1075, 16
        %s1077 = scalar_lea.vmem [#allocation9], %s1076
        // Predicated region
        $region61: #{tpu_custom_call.1} parent=51 // pred_check
          %p1078 = pneg %p215
        $region62: #{tpu_custom_call.1} parent=51 // pred_check_branch
          %1080 = sbr.rel (%p1078) target = $region64
        $region63: #{tpu_custom_call.1} parent=51 // pred_region
          %s1082 = ssub.s32 256, 256
          %1083 = vsyncadd %s1074, %s1082
          %s1084 = smul.addr %s24, 2
          %s1085 = smul.addr %s1084, 128
          %s1086 = scalar_lea.hbm %s8, %s1085
          %s1087 = sshll.u32 %s1077, 4
          %s1088 = int_to_ptr.vmem [resolvable:$true] %s1087
          %1093 = dma.vmem_to_hbm [thread:$0]  %s1088, 256, %s1086, %s1074, 128, 128, 8
        $region64: #{tpu_custom_call.1} parent=51 // pred_fallthru
          _
      $region52: #{tpu_custom_call.1} parent=5 // pred_fallthru
        _
      %p1094 = scmp.le.s32.totalorder 2, %s19
      // Predicated region
      $region65: #{tpu_custom_call.1} parent=5 // pred_check
        %p1095 = pneg %p1094
      $region66: #{tpu_custom_call.1} parent=5 // pred_check_branch
        %1097 = sbr.rel (%p1095) target = $region68
      $region67: #{tpu_custom_call.1} parent=5 // pred_region
        %s1098 = ssub.s32 %s19, 2
        // Predicated region
        $region69: #{tpu_custom_call.1} parent=67 // pred_check
          %p1099 = pneg %p221
        $region70: #{tpu_custom_call.1} parent=67 // pred_check_branch
          %1101 = sbr.rel (%p1099) target = $region72
        $region71: #{tpu_custom_call.1} parent=67 // pred_region
          %s1102 = sand.u32 %s206, 1
          %s1103 = scalar_lea.sflag [#allocation6], %s1102
          %s1104 = sand.u32 %s206, 1
          %s1105 = smul.addr %s1104, 16
          %s1106 = scalar_lea.vmem [#allocation9], %s1105
          %1107 = dma.done %s1103, 256
        $region72: #{tpu_custom_call.1} parent=67 // pred_fallthru
          _
      $region68: #{tpu_custom_call.1} parent=5 // pred_fallthru
        _
    $region6: #{tpu_custom_call.1} parent=1 // loop_footer
      %s23 = sadd.s32 1, %s19
    $region7: #{tpu_custom_call.1} parent=1 // loop_footer_branch
      %18 = sbr.rel target = $region3
    $region8: #{tpu_custom_call.1} parent=1 // loop_exit
      _
    %1108 = vsyncpa [#allocation5], 1
    %s1109 = scalar_lea.sflag [#allocation5], 1
    %1110 = vsyncpa %s1109, 1
    %1111 = vsyncpa [#allocation8], 1
    %1112 = vsyncpa [#allocation6], 1
    %s1113 = scalar_lea.sflag [#allocation6], 1
    %1114 = vsyncpa %s1113, 1

</llo_original>
